<compile_context>
chip_gen: v6e
topology: v6e:2x2x1
jax: 0.10.0
libtpu: 0.0.40
codegen_flags: <defaults>
</compile_context>

<pallas_src>
import functools

import jax
import jax.numpy as jnp
from jax.experimental import pallas as pl
from jax.experimental.pallas import tpu as pltpu


# ------------------------------ small helpers ------------------------------ #

def _round_up(v, m):
    return (v + m - 1) // m * m


def _nbytes(arr):
    return int(arr.size) * int(jnp.dtype(arr.dtype).itemsize)


def _fold_bn(g, b, m, v, eps):
    scale = g / jnp.sqrt(v + eps)
    shift = b - m * scale
    return scale, shift


def _vmem_limit_bytes():
    # Generation-aware VMEM budget (~3/4 of physical, capped), safe fallback.
    try:
        cap = int(pltpu.get_tpu_info().vmem_capacity_bytes)
        return int(min(max(cap * 3 // 4, 32 * 1024 * 1024), 100 * 1024 * 1024))
    except Exception:
        return 32 * 1024 * 1024


# ------------------------------ Pallas kernels ------------------------------ #

def _conv1_into_scratch(p1_ref, w1_ref, sc_ref, sh_ref, mask_ref, p2_ref):
    """conv1 as ONE K-stacked matmul + fused bn2/relu2 epilogue, written into
    the flattened-with-halo f32 VMEM scratch that conv2 reads from.

    p1_ref  : (R1, Kp1)  im2col LHS for this image (row i = hp*Wp2 + wp)
    w1_ref  : (Kp1, Cp)  tap-stacked conv1 weights
    sc/sh   : (1, Cp)    folded bn2 scale / shift
    mask_ref: (R1, 1)    1.0 on valid rows, 0.0 on halo / padding rows
    p2_ref  : (R1, Cp)   scratch = zero-padded conv2 input, flat-halo layout
    """
    acc = jnp.dot(p1_ref[...], w1_ref[...], preferred_element_type=jnp.float32)
    y = jnp.maximum(acc * sc_ref[...] + sh_ref[...], 0.0) * mask_ref[...]
    p2_ref[...] = y


def _conv2_from_scratch(p2_ref, w2_ref, Wp2, Lo2, cdt):
    """3x3 stride-1 conv on the flat-with-halo scratch: each tap is a
    contiguous row-range slice feeding a full-K (Cp=128) MXU matmul."""
    cp = w2_ref.shape[-1]
    acc = jnp.zeros((Lo2, cp), jnp.float32)
    for kh in range(3):
        for kw in range(3):
            off = kh * Wp2 + kw                        # static Python int
            lhs = p2_ref[off:off + Lo2, :].astype(cdt)
            acc = acc + jnp.dot(lhs, w2_ref[kh * 3 + kw],
                                preferred_element_type=jnp.float32)
    return acc


def block_kernel_identity(p1_ref, r_ref, w1_ref, w2_ref, sc_ref, sh_ref,
                          mask_ref, o_ref, p2_ref, *, Wp2, Lo2, cdt):
    _conv1_into_scratch(p1_ref, w1_ref, sc_ref, sh_ref, mask_ref, p2_ref)
    acc = _conv2_from_scratch(p2_ref, w2_ref, Wp2, Lo2, cdt)
    # Identity shortcut: exact f32 add of the original input (no matmul).
    o_ref[...] = (acc + r_ref[...]).astype(o_ref.dtype)


def block_kernel_shortcut(p1_ref, r_ref, w1_ref, w2_ref, wr_ref, sc_ref,
                          sh_ref, mask_ref, o_ref, p2_ref, *, Wp2, Lo2, cdt):
    _conv1_into_scratch(p1_ref, w1_ref, sc_ref, sh_ref, mask_ref, p2_ref)
    acc = _conv2_from_scratch(p2_ref, w2_ref, Wp2, Lo2, cdt)
    # convShortcut (1x1, stride s) fused as one full-K matmul in the epilogue.
    resid = jnp.dot(r_ref[...], wr_ref[...], preferred_element_type=jnp.float32)
    o_ref[...] = (acc + resid).astype(o_ref.dtype)


# --------------------------------- JAX glue --------------------------------- #

@functools.partial(jax.jit,
                   static_argnames=("stride", "equal_in_out", "compute_dtype"))
def basic_block_pallas(x_nchw, p, *, stride, equal_in_out, eps=1e-5,
                       compute_dtype=jnp.float32):
    f32 = jnp.float32
    cdt = compute_dtype

    x = jnp.transpose(x_nchw, (0, 2, 3, 1)).astype(f32)        # NCHW -> NHWC
    N, H, W, Cin = x.shape
    Cout = p['w1'].shape[0]
    s = stride
    Ho = (H + 2 - 3) // s + 1
    Wo = (W + 2 - 3) // s + 1
    Hp2, Wp2 = Ho + 2, Wo + 2          # conv2 input spatial extent (with halo)
    Cp = _round_up(Cout, 128)          # lane-dense channels (v5e-native 128)
    Kp1 = _round_up(9 * Cin, 128)      # K-stacked conv1 contraction, lane dense
    Crp = _round_up(Cin, 128)          # lane-dense shortcut input channels
    Lo2 = Ho * Wp2                     # conv2 output rows, flat-halo layout
    R1 = _round_up(Hp2 * Wp2 + 2, 16)  # scratch/LHS rows (>= max tap read)

    s1, t1 = _fold_bn(p['bn1_g'], p['bn1_b'], p['bn1_m'], p['bn1_v'], eps)
    s2, t2 = _fold_bn(p['bn2_g'], p['bn2_b'], p['bn2_m'], p['bn2_v'], eps)

    # relu1(bn1(x)) -- fused by XLA into the im2col slab construction below.
    a = jnp.maximum(x * s1 + t1, 0.0)

    # conv1 im2col with the 9 taps stacked along the contraction axis; rows
    # are ordered in conv2's "flat with halo" layout (row i = hp*Wp2 + wp holds
    # the patch for conv1 output (hp-1, wp-1); halo / padding rows are zero).
    ap = jnp.pad(a, ((0, 0), (1, 1), (1, 1), (0, 0)))
    taps = [ap[:, kh:kh + s * (Ho - 1) + 1:s, kw:kw + s * (Wo - 1) + 1:s, :]
            for kh in range(3) for kw in range(3)]
    patches = jnp.concatenate(taps, axis=-1)                    # (N,Ho,Wo,9Cin)
    patches = jnp.pad(patches, ((0, 0), (1, 1), (1, 1), (0, Kp1 - 9 * Cin)))
    patches = patches.reshape(N, Hp2 * Wp2, Kp1)
    patches = jnp.pad(patches,
                      ((0, 0), (0, R1 - Hp2 * Wp2), (0, 0))).astype(cdt)

    # Valid-row mask: zeroes the conv2 halo after the bn2/relu2 epilogue.
    mask = jnp.pad(jnp.ones((Ho, Wo), f32), ((1, 1), (1, 1)))
    mask = mask.reshape(Hp2 * Wp2, 1)
    mask = jnp.pad(mask, ((0, R1 - Hp2 * Wp2), (0, 0)))

    # Weights: conv1 tap-stacked (Kp1, Cp); conv2 per-tap (9, Cp, Cp).
    w1 = jnp.transpose(p['w1'], (2, 3, 1, 0)).reshape(9 * Cin, Cout)
    w1 = jnp.pad(w1, ((0, Kp1 - 9 * Cin), (0, Cp - Cout))).astype(cdt)
    w2 = jnp.transpose(p['w2'], (2, 3, 1, 0)).reshape(9, Cout, Cout)
    w2 = jnp.pad(w2, ((0, 0), (0, Cp - Cout), (0, Cp - Cout))).astype(cdt)
    s2p = jnp.pad(s2, (0, Cp - Cout)).reshape(1, Cp).astype(f32)
    t2p = jnp.pad(t2, (0, Cp - Cout)).reshape(1, Cp).astype(f32)

    # Residual, laid out in the same flat-halo row order as the kernel output.
    if equal_in_out:
        # identity shortcut = original x (exact f32 add in the epilogue)
        r = jnp.pad(x, ((0, 0), (0, 0), (0, Wp2 - Wo), (0, Cp - Cin)))
        r = r.reshape(N, Lo2, Cp)
    else:
        # convShortcut input = relu1(bn1(x)) subsampled by the stride
        rsc = a[:, ::s, ::s, :]
        r = jnp.pad(rsc, ((0, 0), (0, 0), (0, Wp2 - Wo), (0, Crp - Cin)))
        r = r.reshape(N, Lo2, Crp).astype(cdt)
        wsc = jnp.transpose(p['wsc'], (2, 3, 1, 0)).reshape(Cin, Cout)
        wr = jnp.pad(wsc, ((0, Crp - Cin), (0, Cp - Cout))).astype(cdt)

    cparams = pltpu.CompilerParams(
        dimension_semantics=("parallel",),
        vmem_limit_bytes=_vmem_limit_bytes())

    out_shape = jax.ShapeDtypeStruct((N, Lo2, Cp), f32)
    out_bytes = N * Lo2 * Cp * 4

    if equal_in_out:
        flops = 2 * N * (R1 * Kp1 * Cp + 9 * Lo2 * Cp * Cp)
        bytes_acc = (_nbytes(patches) + _nbytes(r) + _nbytes(w1) + _nbytes(w2)
                     + _nbytes(s2p) + _nbytes(t2p) + _nbytes(mask) + out_bytes)
        out_flat = pl.pallas_call(
            functools.partial(block_kernel_identity, Wp2=Wp2, Lo2=Lo2, cdt=cdt),
            out_shape=out_shape,
            grid=(N,),
            in_specs=[
                pl.BlockSpec((None, R1, Kp1), lambda n: (n, 0, 0)),
                pl.BlockSpec((None, Lo2, Cp), lambda n: (n, 0, 0)),
                pl.BlockSpec((Kp1, Cp), lambda n: (0, 0)),
                pl.BlockSpec((9, Cp, Cp), lambda n: (0, 0, 0)),
                pl.BlockSpec((1, Cp), lambda n: (0, 0)),
                pl.BlockSpec((1, Cp), lambda n: (0, 0)),
                pl.BlockSpec((R1, 1), lambda n: (0, 0)),
            ],
            out_specs=pl.BlockSpec((None, Lo2, Cp), lambda n: (n, 0, 0)),
            scratch_shapes=[pltpu.VMEM((R1, Cp), f32)],
            compiler_params=cparams,
            cost_estimate=pl.CostEstimate(flops=int(flops), transcendentals=0,
                                          bytes_accessed=int(bytes_acc)),
        )(patches, r, w1, w2, s2p, t2p, mask)
    else:
        flops = 2 * N * (R1 * Kp1 * Cp + 9 * Lo2 * Cp * Cp + Lo2 * Crp * Cp)
        bytes_acc = (_nbytes(patches) + _nbytes(r) + _nbytes(w1) + _nbytes(w2)
                     + _nbytes(wr) + _nbytes(s2p) + _nbytes(t2p)
                     + _nbytes(mask) + out_bytes)
        out_flat = pl.pallas_call(
            functools.partial(block_kernel_shortcut, Wp2=Wp2, Lo2=Lo2, cdt=cdt),
            out_shape=out_shape,
            grid=(N,),
            in_specs=[
                pl.BlockSpec((None, R1, Kp1), lambda n: (n, 0, 0)),
                pl.BlockSpec((None, Lo2, Crp), lambda n: (n, 0, 0)),
                pl.BlockSpec((Kp1, Cp), lambda n: (0, 0)),
                pl.BlockSpec((9, Cp, Cp), lambda n: (0, 0, 0)),
                pl.BlockSpec((Crp, Cp), lambda n: (0, 0)),
                pl.BlockSpec((1, Cp), lambda n: (0, 0)),
                pl.BlockSpec((1, Cp), lambda n: (0, 0)),
                pl.BlockSpec((R1, 1), lambda n: (0, 0)),
            ],
            out_specs=pl.BlockSpec((None, Lo2, Cp), lambda n: (n, 0, 0)),
            scratch_shapes=[pltpu.VMEM((R1, Cp), f32)],
            compiler_params=cparams,
            cost_estimate=pl.CostEstimate(flops=int(flops), transcendentals=0,
                                          bytes_accessed=int(bytes_acc)),
        )(patches, r, w1, w2, wr, s2p, t2p, mask)

    # Drop the halo/junk columns and the channel padding (fused XLA slice).
    out = out_flat.reshape(N, Ho, Wp2, Cp)[:, :, :Wo, :Cout]
    return jnp.transpose(out, (0, 3, 1, 2)).astype(x_nchw.dtype)  # NHWC->NCHW


# ----------------------------- pure-JAX reference ---------------------------- #

def basic_block_ref(x, p, stride, equal_in_out, eps=1e-5):
    def bn(y, g, b, m, v):
        return ((y - m[None, :, None, None])
                / jnp.sqrt(v[None, :, None, None] + eps)
                * g[None, :, None, None] + b[None, :, None, None])

    def conv(y, w, s, pad):
        return jax.lax.conv_general_dilated(
            y, w, (s, s), ((pad, pad), (pad, pad)),
            dimension_numbers=('NCHW', 'OIHW', 'NCHW'))

    a = jax.nn.relu(bn(x, p['bn1_g'], p['bn1_b'], p['bn1_m'], p['bn1_v']))
    out = conv(a, p['w1'], stride, 1)
    out = jax.nn.relu(bn(out, p['bn2_g'], p['bn2_b'], p['bn2_m'], p['bn2_v']))
    out = conv(out, p['w2'], 1, 1)
    if equal_in_out:
        return x + out
    return conv(a, p['wsc'], stride, 0) + out


# --------------------------------- params ------------------------------------ #

def init_params(key, cin, cout, equal_in_out):
    ks = jax.random.split(key, 3)
    f32 = jnp.float32
    p = {
        'bn1_g': 1.0 + 0.10 * jnp.arange(cin, dtype=f32),
        'bn1_b': 0.05 * jnp.arange(cin, dtype=f32),
        'bn1_m': 0.02 * jnp.arange(cin, dtype=f32) - 0.03,
        'bn1_v': 1.0 + 0.04 * jnp.arange(cin, dtype=f32),
        'bn2_g': 1.0 - 0.05 * jnp.arange(cout, dtype=f32) / max(cout, 1),
        'bn2_b': -0.02 * jnp.arange(cout, dtype=f32),
        'bn2_m': 0.01 * jnp.arange(cout, dtype=f32),
        'bn2_v': 1.0 + 0.03 * jnp.arange(cout, dtype=f32),
        'w1': 0.1 * jax.random.normal(ks[0], (cout, cin, 3, 3), f32),
        'w2': 0.1 * jax.random.normal(ks[1], (cout, cout, 3, 3), f32),
    }
    if not equal_in_out:
        p['wsc'] = 0.1 * jax.random.normal(ks[2], (cout, cin, 1, 1), f32)
    return p


# ----------------------------------- main ------------------------------------ #

if __name__ == "__main__":
    key = jax.random.PRNGKey(0)
    kx, kp1, kp2 = jax.random.split(key, 3)

    x = jax.random.normal(kx, (2, 4, 16, 16), jnp.float32)    # NCHW

    # Case 1: in_planes != out_planes, stride 2 (fused convShortcut path).
    p1 = init_params(kp1, 4, 8, equal_in_out=False)
    out1 = jax.block_until_ready(
        basic_block_pallas(x, p1, stride=2, equal_in_out=False))
    ref1 = basic_block_ref(x, p1, stride=2, equal_in_out=False)
    assert out1.shape == (2, 8, 8, 8)
    assert jnp.allclose(out1, ref1, atol=2e-4, rtol=2e-4), \
        "mismatch (shortcut case)"

    # Case 2: in_planes == out_planes, stride 1 (identity shortcut path).
    p2 = init_params(kp2, 4, 4, equal_in_out=True)
    out2 = jax.block_until_ready(
        basic_block_pallas(x, p2, stride=1, equal_in_out=True))
    ref2 = basic_block_ref(x, p2, stride=1, equal_in_out=True)
    assert out2.shape == (2, 4, 16, 16)
    assert jnp.allclose(out2, ref2, atol=2e-4, rtol=2e-4), \
        "mismatch (identity case)"

    # bf16 MXU fast path (activation slabs / weights bf16, f32 accumulate;
    # the identity residual add stays exact f32).
    out1_bf = jax.block_until_ready(
        basic_block_pallas(x, p1, stride=2, equal_in_out=False,
                           compute_dtype=jnp.bfloat16))
    assert out1_bf.shape == (2, 8, 8, 8)
    assert jnp.max(jnp.abs(out1_bf - ref1)) < 0.25, \
        "mismatch (bf16 shortcut case)"

    out2_bf = jax.block_until_ready(
        basic_block_pallas(x, p2, stride=1, equal_in_out=True,
                           compute_dtype=jnp.bfloat16))
    assert out2_bf.shape == (2, 4, 16, 16)
    assert jnp.max(jnp.abs(out2_bf - ref2)) < 0.25, \
        "mismatch (bf16 identity case)"

    print("KERNEL_OK")
</pallas_src>

<mosaic_0001>
module attributes {stable_mosaic.version = 11 : i64} {
  func.func @block_kernel_shortcut(%arg0: i32, %arg1: memref<1x112x128xf32, #tpu.memory_space<vmem>>, %arg2: memref<1x80x128xf32, #tpu.memory_space<vmem>>, %arg3: memref<128x128xf32, #tpu.memory_space<vmem>>, %arg4: memref<9x128x128xf32, #tpu.memory_space<vmem>>, %arg5: memref<128x128xf32, #tpu.memory_space<vmem>>, %arg6: memref<1x128xf32, #tpu.memory_space<vmem>>, %arg7: memref<1x128xf32, #tpu.memory_space<vmem>>, %arg8: memref<112x1xf32, #tpu.memory_space<vmem>>, %arg9: memref<1x80x128xf32, #tpu.memory_space<vmem>>, %arg10: memref<112x128xf32, #tpu.memory_space<vmem>>) attributes {dimension_semantics = [#tpu.dimension_semantics<parallel>], iteration_bounds = array<i64: 2>, scalar_prefetch = 0 : i64, scratch_operands = 1 : i64, tpu.core_type = #tpu.core_type<tc>, window_params = [{transform_indices = @transform_0, window_bounds = array<i64: 1, 112, 128>}, {transform_indices = @transform_1, window_bounds = array<i64: 1, 80, 128>}, {pipeline_mode = #tpu.pipeline_mode<synchronous>, transform_indices = @transform_2, window_bounds = array<i64: 128, 128>}, {pipeline_mode = #tpu.pipeline_mode<synchronous>, transform_indices = @transform_3, window_bounds = array<i64: 9, 128, 128>}, {pipeline_mode = #tpu.pipeline_mode<synchronous>, transform_indices = @transform_4, window_bounds = array<i64: 128, 128>}, {pipeline_mode = #tpu.pipeline_mode<synchronous>, transform_indices = @transform_5, window_bounds = array<i64: 1, 128>}, {pipeline_mode = #tpu.pipeline_mode<synchronous>, transform_indices = @transform_6, window_bounds = array<i64: 1, 128>}, {pipeline_mode = #tpu.pipeline_mode<synchronous>, transform_indices = @transform_7, window_bounds = array<i64: 112, 1>}, {transform_indices = @transform_8, window_bounds = array<i64: 1, 80, 128>}]} {
    %c0 = arith.constant 0 : index
    %c0_0 = arith.constant 0 : index
    %c0_1 = arith.constant 0 : index
    %0 = vector.load %arg1[%c0, %c0_0, %c0_1] : memref<1x112x128xf32, #tpu.memory_space<vmem>>, vector<1x112x128xf32>
    %1 = vector.shape_cast %0 : vector<1x112x128xf32> to vector<112x128xf32>
    %c0_2 = arith.constant 0 : index
    %c0_3 = arith.constant 0 : index
    %2 = vector.load %arg3[%c0_2, %c0_3] : memref<128x128xf32, #tpu.memory_space<vmem>>, vector<128x128xf32>
    %cst = arith.constant dense<0.000000e+00> : vector<112x128xf32>
    %3 = tpu.matmul %1, %2, %cst {dimension_numbers = #tpu.dot_dimension_numbers<[1], [0], [0], [1], [0, 0, 1, 1], [], []>} : vector<112x128xf32>, vector<128x128xf32>, vector<112x128xf32> -> vector<112x128xf32>
    %c0_4 = arith.constant 0 : index
    %c0_5 = arith.constant 0 : index
    %4 = vector.load %arg6[%c0_4, %c0_5] : memref<1x128xf32, #tpu.memory_space<vmem>>, vector<1x128xf32>
    %5 = vector.broadcast %4 : vector<1x128xf32> to vector<112x128xf32>
    %6 = arith.mulf %3, %5 : vector<112x128xf32>
    %c0_6 = arith.constant 0 : index
    %c0_7 = arith.constant 0 : index
    %7 = vector.load %arg7[%c0_6, %c0_7] : memref<1x128xf32, #tpu.memory_space<vmem>>, vector<1x128xf32>
    %8 = vector.broadcast %7 : vector<1x128xf32> to vector<112x128xf32>
    %9 = arith.addf %6, %8 : vector<112x128xf32>
    %cst_8 = arith.constant 0.000000e+00 : f32
    %10 = vector.broadcast %cst_8 : f32 to vector<112x128xf32>
    %11 = arith.maximumf %9, %10 : vector<112x128xf32>
    %c0_9 = arith.constant 0 : index
    %c0_10 = arith.constant 0 : index
    %12 = vector.load %arg8[%c0_9, %c0_10] : memref<112x1xf32, #tpu.memory_space<vmem>>, vector<112x1xf32>
    %13 = vector.broadcast %12 : vector<112x1xf32> to vector<112x128xf32>
    %14 = arith.mulf %11, %13 : vector<112x128xf32>
    %c0_11 = arith.constant 0 : index
    %c0_12 = arith.constant 0 : index
    %15 = vector.load %arg10[%c0_11, %c0_12] : memref<112x128xf32, #tpu.memory_space<vmem>>, vector<112x128xf32>
    tpu.vector_store %arg10[%c0_11, %c0_12], %14 {strides = array<i32>} : memref<112x128xf32, #tpu.memory_space<vmem>>, vector<112x128xf32>,
    %cst_13 = arith.constant 0.000000e+00 : f32
    %16 = vector.broadcast %cst_13 : f32 to vector<80x128xf32>
    %c0_14 = arith.constant 0 : index
    %c0_15 = arith.constant 0 : index
    %17 = vector.load %arg10[%c0_14, %c0_15] : memref<112x128xf32, #tpu.memory_space<vmem>>, vector<80x128xf32>
    %c0_16 = arith.constant 0 : index
    %c0_17 = arith.constant 0 : index
    %c0_18 = arith.constant 0 : index
    %18 = vector.load %arg4[%c0_16, %c0_17, %c0_18] : memref<9x128x128xf32, #tpu.memory_space<vmem>>, vector<1x128x128xf32>
    %19 = vector.shape_cast %18 : vector<1x128x128xf32> to vector<128x128xf32>
    %cst_19 = arith.constant dense<0.000000e+00> : vector<80x128xf32>
    %20 = tpu.matmul %17, %19, %cst_19 {dimension_numbers = #tpu.dot_dimension_numbers<[1], [0], [0], [1], [0, 0, 1, 1], [], []>} : vector<80x128xf32>, vector<128x128xf32>, vector<80x128xf32> -> vector<80x128xf32>
    %21 = arith.addf %16, %20 : vector<80x128xf32>
    %c1 = arith.constant 1 : index
    %c0_20 = arith.constant 0 : index
    %22 = vector.load %arg10[%c1, %c0_20] : memref<112x128xf32, #tpu.memory_space<vmem>>, vector<80x128xf32>
    %c1_21 = arith.constant 1 : index
    %c0_22 = arith.constant 0 : index
    %c0_23 = arith.constant 0 : index
    %23 = vector.load %arg4[%c1_21, %c0_22, %c0_23] : memref<9x128x128xf32, #tpu.memory_space<vmem>>, vector<1x128x128xf32>
    %24 = vector.shape_cast %23 : vector<1x128x128xf32> to vector<128x128xf32>
    %cst_24 = arith.constant dense<0.000000e+00> : vector<80x128xf32>
    %25 = tpu.matmul %22, %24, %cst_24 {dimension_numbers = #tpu.dot_dimension_numbers<[1], [0], [0], [1], [0, 0, 1, 1], [], []>} : vector<80x128xf32>, vector<128x128xf32>, vector<80x128xf32> -> vector<80x128xf32>
    %26 = arith.addf %21, %25 : vector<80x128xf32>
    %c2 = arith.constant 2 : index
    %c0_25 = arith.constant 0 : index
    %27 = vector.load %arg10[%c2, %c0_25] : memref<112x128xf32, #tpu.memory_space<vmem>>, vector<80x128xf32>
    %c2_26 = arith.constant 2 : index
    %c0_27 = arith.constant 0 : index
    %c0_28 = arith.constant 0 : index
    %28 = vector.load %arg4[%c2_26, %c0_27, %c0_28] : memref<9x128x128xf32, #tpu.memory_space<vmem>>, vector<1x128x128xf32>
    %29 = vector.shape_cast %28 : vector<1x128x128xf32> to vector<128x128xf32>
    %cst_29 = arith.constant dense<0.000000e+00> : vector<80x128xf32>
    %30 = tpu.matmul %27, %29, %cst_29 {dimension_numbers = #tpu.dot_dimension_numbers<[1], [0], [0], [1], [0, 0, 1, 1], [], []>} : vector<80x128xf32>, vector<128x128xf32>, vector<80x128xf32> -> vector<80x128xf32>
    %31 = arith.addf %26, %30 : vector<80x128xf32>
    %c10 = arith.constant 10 : index
    %c0_30 = arith.constant 0 : index
    %32 = vector.load %arg10[%c10, %c0_30] : memref<112x128xf32, #tpu.memory_space<vmem>>, vector<80x128xf32>
    %c3 = arith.constant 3 : index
    %c0_31 = arith.constant 0 : index
    %c0_32 = arith.constant 0 : index
    %33 = vector.load %arg4[%c3, %c0_31, %c0_32] : memref<9x128x128xf32, #tpu.memory_space<vmem>>, vector<1x128x128xf32>
    %34 = vector.shape_cast %33 : vector<1x128x128xf32> to vector<128x128xf32>
    %cst_33 = arith.constant dense<0.000000e+00> : vector<80x128xf32>
    %35 = tpu.matmul %32, %34, %cst_33 {dimension_numbers = #tpu.dot_dimension_numbers<[1], [0], [0], [1], [0, 0, 1, 1], [], []>} : vector<80x128xf32>, vector<128x128xf32>, vector<80x128xf32> -> vector<80x128xf32>
    %36 = arith.addf %31, %35 : vector<80x128xf32>
    %c11 = arith.constant 11 : index
    %c0_34 = arith.constant 0 : index
    %37 = vector.load %arg10[%c11, %c0_34] : memref<112x128xf32, #tpu.memory_space<vmem>>, vector<80x128xf32>
    %c4 = arith.constant 4 : index
    %c0_35 = arith.constant 0 : index
    %c0_36 = arith.constant 0 : index
    %38 = vector.load %arg4[%c4, %c0_35, %c0_36] : memref<9x128x128xf32, #tpu.memory_space<vmem>>, vector<1x128x128xf32>
    %39 = vector.shape_cast %38 : vector<1x128x128xf32> to vector<128x128xf32>
    %cst_37 = arith.constant dense<0.000000e+00> : vector<80x128xf32>
    %40 = tpu.matmul %37, %39, %cst_37 {dimension_numbers = #tpu.dot_dimension_numbers<[1], [0], [0], [1], [0, 0, 1, 1], [], []>} : vector<80x128xf32>, vector<128x128xf32>, vector<80x128xf32> -> vector<80x128xf32>
    %41 = arith.addf %36, %40 : vector<80x128xf32>
    %c12 = arith.constant 12 : index
    %c0_38 = arith.constant 0 : index
    %42 = vector.load %arg10[%c12, %c0_38] : memref<112x128xf32, #tpu.memory_space<vmem>>, vector<80x128xf32>
    %c5 = arith.constant 5 : index
    %c0_39 = arith.constant 0 : index
    %c0_40 = arith.constant 0 : index
    %43 = vector.load %arg4[%c5, %c0_39, %c0_40] : memref<9x128x128xf32, #tpu.memory_space<vmem>>, vector<1x128x128xf32>
    %44 = vector.shape_cast %43 : vector<1x128x128xf32> to vector<128x128xf32>
    %cst_41 = arith.constant dense<0.000000e+00> : vector<80x128xf32>
    %45 = tpu.matmul %42, %44, %cst_41 {dimension_numbers = #tpu.dot_dimension_numbers<[1], [0], [0], [1], [0, 0, 1, 1], [], []>} : vector<80x128xf32>, vector<128x128xf32>, vector<80x128xf32> -> vector<80x128xf32>
    %46 = arith.addf %41, %45 : vector<80x128xf32>
    %c20 = arith.constant 20 : index
    %c0_42 = arith.constant 0 : index
    %47 = vector.load %arg10[%c20, %c0_42] : memref<112x128xf32, #tpu.memory_space<vmem>>, vector<80x128xf32>
    %c6 = arith.constant 6 : index
    %c0_43 = arith.constant 0 : index
    %c0_44 = arith.constant 0 : index
    %48 = vector.load %arg4[%c6, %c0_43, %c0_44] : memref<9x128x128xf32, #tpu.memory_space<vmem>>, vector<1x128x128xf32>
    %49 = vector.shape_cast %48 : vector<1x128x128xf32> to vector<128x128xf32>
    %cst_45 = arith.constant dense<0.000000e+00> : vector<80x128xf32>
    %50 = tpu.matmul %47, %49, %cst_45 {dimension_numbers = #tpu.dot_dimension_numbers<[1], [0], [0], [1], [0, 0, 1, 1], [], []>} : vector<80x128xf32>, vector<128x128xf32>, vector<80x128xf32> -> vector<80x128xf32>
    %51 = arith.addf %46, %50 : vector<80x128xf32>
    %c21 = arith.constant 21 : index
    %c0_46 = arith.constant 0 : index
    %52 = vector.load %arg10[%c21, %c0_46] : memref<112x128xf32, #tpu.memory_space<vmem>>, vector<80x128xf32>
    %c7 = arith.constant 7 : index
    %c0_47 = arith.constant 0 : index
    %c0_48 = arith.constant 0 : index
    %53 = vector.load %arg4[%c7, %c0_47, %c0_48] : memref<9x128x128xf32, #tpu.memory_space<vmem>>, vector<1x128x128xf32>
    %54 = vector.shape_cast %53 : vector<1x128x128xf32> to vector<128x128xf32>
    %cst_49 = arith.constant dense<0.000000e+00> : vector<80x128xf32>
    %55 = tpu.matmul %52, %54, %cst_49 {dimension_numbers = #tpu.dot_dimension_numbers<[1], [0], [0], [1], [0, 0, 1, 1], [], []>} : vector<80x128xf32>, vector<128x128xf32>, vector<80x128xf32> -> vector<80x128xf32>
    %56 = arith.addf %51, %55 : vector<80x128xf32>
    %c22 = arith.constant 22 : index
    %c0_50 = arith.constant 0 : index
    %57 = vector.load %arg10[%c22, %c0_50] : memref<112x128xf32, #tpu.memory_space<vmem>>, vector<80x128xf32>
    %c8 = arith.constant 8 : index
    %c0_51 = arith.constant 0 : index
    %c0_52 = arith.constant 0 : index
    %58 = vector.load %arg4[%c8, %c0_51, %c0_52] : memref<9x128x128xf32, #tpu.memory_space<vmem>>, vector<1x128x128xf32>
    %59 = vector.shape_cast %58 : vector<1x128x128xf32> to vector<128x128xf32>
    %cst_53 = arith.constant dense<0.000000e+00> : vector<80x128xf32>
    %60 = tpu.matmul %57, %59, %cst_53 {dimension_numbers = #tpu.dot_dimension_numbers<[1], [0], [0], [1], [0, 0, 1, 1], [], []>} : vector<80x128xf32>, vector<128x128xf32>, vector<80x128xf32> -> vector<80x128xf32>
    %61 = arith.addf %56, %60 : vector<80x128xf32>
    %c0_54 = arith.constant 0 : index
    %c0_55 = arith.constant 0 : index
    %c0_56 = arith.constant 0 : index
    %62 = vector.load %arg2[%c0_54, %c0_55, %c0_56] : memref<1x80x128xf32, #tpu.memory_space<vmem>>, vector<1x80x128xf32>
    %63 = vector.shape_cast %62 : vector<1x80x128xf32> to vector<80x128xf32>
    %c0_57 = arith.constant 0 : index
    %c0_58 = arith.constant 0 : index
    %64 = vector.load %arg5[%c0_57, %c0_58] : memref<128x128xf32, #tpu.memory_space<vmem>>, vector<128x128xf32>
    %cst_59 = arith.constant dense<0.000000e+00> : vector<80x128xf32>
    %65 = tpu.matmul %63, %64, %cst_59 {dimension_numbers = #tpu.dot_dimension_numbers<[1], [0], [0], [1], [0, 0, 1, 1], [], []>} : vector<80x128xf32>, vector<128x128xf32>, vector<80x128xf32> -> vector<80x128xf32>
    %66 = arith.addf %61, %65 : vector<80x128xf32>
    %c0_60 = arith.constant 0 : index
    %c0_61 = arith.constant 0 : index
    %c0_62 = arith.constant 0 : index
    %67 = vector.load %arg9[%c0_60, %c0_61, %c0_62] : memref<1x80x128xf32, #tpu.memory_space<vmem>>, vector<1x80x128xf32>
    %68 = vector.shape_cast %67 : vector<1x80x128xf32> to vector<80x128xf32>
    %69 = vector.shape_cast %66 : vector<80x128xf32> to vector<1x80x128xf32>
    tpu.vector_store %arg9[%c0_60, %c0_61, %c0_62], %69 {strides = array<i32>} : memref<1x80x128xf32, #tpu.memory_space<vmem>>, vector<1x80x128xf32>,
    return
  }
  func.func @transform_0(%arg0: i32) -> (i32, i32, i32) {
    %c0_i32 = arith.constant 0 : i32
    %c0_i32_0 = arith.constant 0 : i32
    %c0_i32_1 = arith.constant 0 : i32
    return %arg0, %c0_i32, %c0_i32_0 : i32, i32, i32
  }
  func.func @transform_1(%arg0: i32) -> (i32, i32, i32) {
    %c0_i32 = arith.constant 0 : i32
    %c0_i32_0 = arith.constant 0 : i32
    %c0_i32_1 = arith.constant 0 : i32
    return %arg0, %c0_i32, %c0_i32_0 : i32, i32, i32
  }
  func.func @transform_2(%arg0: i32) -> (i32, i32) {
    %c0_i32 = arith.constant 0 : i32
    %c0_i32_0 = arith.constant 0 : i32
    %c0_i32_1 = arith.constant 0 : i32
    return %c0_i32, %c0_i32_0 : i32, i32
  }
  func.func @transform_3(%arg0: i32) -> (i32, i32, i32) {
    %c0_i32 = arith.constant 0 : i32
    %c0_i32_0 = arith.constant 0 : i32
    %c0_i32_1 = arith.constant 0 : i32
    %c0_i32_2 = arith.constant 0 : i32
    return %c0_i32, %c0_i32_0, %c0_i32_1 : i32, i32, i32
  }
  func.func @transform_4(%arg0: i32) -> (i32, i32) {
    %c0_i32 = arith.constant 0 : i32
    %c0_i32_0 = arith.constant 0 : i32
    %c0_i32_1 = arith.constant 0 : i32
    return %c0_i32, %c0_i32_0 : i32, i32
  }
  func.func @transform_5(%arg0: i32) -> (i32, i32) {
    %c0_i32 = arith.constant 0 : i32
    %c0_i32_0 = arith.constant 0 : i32
    %c0_i32_1 = arith.constant 0 : i32
    return %c0_i32, %c0_i32_0 : i32, i32
  }
  func.func @transform_6(%arg0: i32) -> (i32, i32) {
    %c0_i32 = arith.constant 0 : i32
    %c0_i32_0 = arith.constant 0 : i32
    %c0_i32_1 = arith.constant 0 : i32
    return %c0_i32, %c0_i32_0 : i32, i32
  }
  func.func @transform_7(%arg0: i32) -> (i32, i32) {
    %c0_i32 = arith.constant 0 : i32
    %c0_i32_0 = arith.constant 0 : i32
    %c0_i32_1 = arith.constant 0 : i32
    return %c0_i32, %c0_i32_0 : i32, i32
  }
  func.func @transform_8(%arg0: i32) -> (i32, i32, i32) {
    %c0_i32 = arith.constant 0 : i32
    %c0_i32_0 = arith.constant 0 : i32
    %c0_i32_1 = arith.constant 0 : i32
    return %arg0, %c0_i32, %c0_i32_0 : i32, i32, i32
  }
}

</mosaic_0001>

<llo_original>
// kernel: basic_block_pallas.1
$region0: #{basic_block_pallas.1}
  #allocation0 [shape = 'u32[]', space=smem, size = 0x4, offset = 0x4, fixed_abs, tag = 'smem constant byte address 0x4 - core index']
  #allocation1 [shape = 'u32[144,128]{1,0:T(1,128)}', space=vmem, size = 0x12000, scoped, tag = 'internal scratch']
  #allocation2 [shape = 'f32[112,128]{1,0:T(8,128)}', space=vmem, size = 0xe000, scoped, tag = 'scratch operand']
  %s0 = inlined_call_operand.vmem [shape: f32[2,112,128], index: 0, kind: input, shape index: {}]
  %s1 = inlined_call_operand.vmem [shape: f32[2,80,128], index: 1, kind: input, shape index: {}]
  %s2 = inlined_call_operand.vmem [shape: f32[128,128], index: 2, kind: input, shape index: {}]
  %s3 = inlined_call_operand.vmem [shape: f32[9,128,128], index: 3, kind: input, shape index: {}]
  %s4 = inlined_call_operand.vmem [shape: f32[128,128], index: 4, kind: input, shape index: {}]
  %s5 = inlined_call_operand.vmem [shape: f32[1,128], index: 5, kind: input, shape index: {}]
  %s6 = inlined_call_operand.vmem [shape: f32[1,128], index: 6, kind: input, shape index: {}]
  %s7 = inlined_call_operand.vmem [shape: f32[112,1], index: 7, kind: input, shape index: {}]
  %s8 = inlined_call_operand.vmem [shape: f32[2,80,128], index: 8, kind: output, shape index: {}]
  %s9 = sld [smem:[#allocation0]]
  $region65: #{basic_block_pallas.1} parent=0
    _
  %s11 = ssub.s32 1, %s9
  %s12 = scalar_select 0, %s11, %s9
  loop: start=0, step=1, limit=4
  $region2: #{basic_block_pallas.1} parent=0 // loop_pre_header
    _
  $region3: #{basic_block_pallas.1} parent=0 // loop_header
    %s14 = sphi 0, %s18
    %p15 = scmp.ge.s32.totalorder %s14, 4
    %s24 = sphi 0, %s26
    %s27 = sphi 0, %s24
    %s28 = sphi 0, %s27
    %s44 = sphi 0, %s28
    %s50 = sphi 0, %s52
    %s53 = sphi 0, %s50
    %s54 = sphi 0, %s53
    %s70 = sphi 0, %s54
    %s74 = sphi 0, %s74
    %s76 = sphi 0, %s74
    %s77 = sphi 0, %s76
    %s91 = sphi 0, %s77
    %s95 = sphi 0, %s95
    %s97 = sphi 0, %s95
    %s98 = sphi 0, %s97
    %s112 = sphi 0, %s98
    %s116 = sphi 0, %s116
    %s118 = sphi 0, %s116
    %s119 = sphi 0, %s118
    %s133 = sphi 0, %s119
    %s137 = sphi 0, %s137
    %s139 = sphi 0, %s137
    %s140 = sphi 0, %s139
    %s154 = sphi 0, %s140
    %s158 = sphi 0, %s158
    %s160 = sphi 0, %s158
    %s161 = sphi 0, %s160
    %s175 = sphi 0, %s161
    %s179 = sphi 0, %s179
    %s181 = sphi 0, %s179
    %s182 = sphi 0, %s181
    %s196 = sphi 0, %s182
    %s202 = sphi 0, %s204
    %s205 = sphi 0, %s202
    %s206 = sphi 0, %s205
    %s222 = sphi 0, %s206
  $region4: #{basic_block_pallas.1} parent=0 // loop_header_branch
    %17 = sbr.rel (%p15) target = $region8
  $region5: #{basic_block_pallas.1} parent=0 // loop_body
    %s19 = ssub.s32 %s14, 1
    %s20 = ssub.s32 %s14, 2
    %s21 = sadd.s32 %s14, 1
    %s22 = ssub.s32 %s14, %s21
    %p23 = scmp.eq.s32.totalorder %s22, 0
    %s25 = sadd.s32 %s24, 1
    %s26 = scalar_select %p23, %s24, %s25
    %p29 = pneg %p23
    %p30 = scmp.eq.s32.totalorder %s14, 1
    %p31 = por %p29, %p30
    %p32 = scmp.ne.s32.totalorder %s24, %s27
    %p33 = scmp.eq.s32.totalorder %s14, 0
    %p34 = por %p32, %p33
    %p35 = scmp.ne.s32.totalorder %s24, %s27
    %p36 = scmp.eq.s32.totalorder %s19, 1
    %p37 = por %p35, %p36
    %p38 = scmp.ne.s32.totalorder %s27, %s28
    %p39 = scmp.eq.s32.totalorder %s19, 0
    %p40 = por %p38, %p39
    %p41 = scmp.ne.s32.totalorder %s27, %s28
    %p42 = scmp.eq.s32.totalorder %s20, 1
    %p43 = por %p41, %p42
    %p45 = scmp.ne.s32.totalorder %s28, %s44
    %p46 = scmp.eq.s32.totalorder %s20, 0
    %p47 = por %p45, %p46
    %s48 = ssub.s32 %s14, %s21
    %p49 = scmp.eq.s32.totalorder %s48, 0
    %s51 = sadd.s32 %s50, 1
    %s52 = scalar_select %p49, %s50, %s51
    %p55 = pneg %p49
    %p56 = scmp.eq.s32.totalorder %s14, 1
    %p57 = por %p55, %p56
    %p58 = scmp.ne.s32.totalorder %s50, %s53
    %p59 = scmp.eq.s32.totalorder %s14, 0
    %p60 = por %p58, %p59
    %p61 = scmp.ne.s32.totalorder %s50, %s53
    %p62 = scmp.eq.s32.totalorder %s19, 1
    %p63 = por %p61, %p62
    %p64 = scmp.ne.s32.totalorder %s53, %s54
    %p65 = scmp.eq.s32.totalorder %s19, 0
    %p66 = por %p64, %p65
    %p67 = scmp.ne.s32.totalorder %s53, %s54
    %p68 = scmp.eq.s32.totalorder %s20, 1
    %p69 = por %p67, %p68
    %p71 = scmp.ne.s32.totalorder %s54, %s70
    %p72 = scmp.eq.s32.totalorder %s20, 0
    %p73 = por %p71, %p72
    %s75 = sadd.s32 %s74, 1
    %p78 = scmp.eq.s32.totalorder %s14, 1
    %p79 = scmp.ne.s32.totalorder %s74, %s76
    %p80 = scmp.eq.s32.totalorder %s14, 0
    %p81 = por %p79, %p80
    %p82 = scmp.ne.s32.totalorder %s74, %s76
    %p83 = scmp.eq.s32.totalorder %s19, 1
    %p84 = por %p82, %p83
    %p85 = scmp.ne.s32.totalorder %s76, %s77
    %p86 = scmp.eq.s32.totalorder %s19, 0
    %p87 = por %p85, %p86
    %p88 = scmp.ne.s32.totalorder %s76, %s77
    %p89 = scmp.eq.s32.totalorder %s20, 1
    %p90 = por %p88, %p89
    %p92 = scmp.ne.s32.totalorder %s77, %s91
    %p93 = scmp.eq.s32.totalorder %s20, 0
    %p94 = por %p92, %p93
    %s96 = sadd.s32 %s95, 1
    %p99 = scmp.eq.s32.totalorder %s14, 1
    %p100 = scmp.ne.s32.totalorder %s95, %s97
    %p101 = scmp.eq.s32.totalorder %s14, 0
    %p102 = por %p100, %p101
    %p103 = scmp.ne.s32.totalorder %s95, %s97
    %p104 = scmp.eq.s32.totalorder %s19, 1
    %p105 = por %p103, %p104
    %p106 = scmp.ne.s32.totalorder %s97, %s98
    %p107 = scmp.eq.s32.totalorder %s19, 0
    %p108 = por %p106, %p107
    %p109 = scmp.ne.s32.totalorder %s97, %s98
    %p110 = scmp.eq.s32.totalorder %s20, 1
    %p111 = por %p109, %p110
    %p113 = scmp.ne.s32.totalorder %s98, %s112
    %p114 = scmp.eq.s32.totalorder %s20, 0
    %p115 = por %p113, %p114
    %s117 = sadd.s32 %s116, 1
    %p120 = scmp.eq.s32.totalorder %s14, 1
    %p121 = scmp.ne.s32.totalorder %s116, %s118
    %p122 = scmp.eq.s32.totalorder %s14, 0
    %p123 = por %p121, %p122
    %p124 = scmp.ne.s32.totalorder %s116, %s118
    %p125 = scmp.eq.s32.totalorder %s19, 1
    %p126 = por %p124, %p125
    %p127 = scmp.ne.s32.totalorder %s118, %s119
    %p128 = scmp.eq.s32.totalorder %s19, 0
    %p129 = por %p127, %p128
    %p130 = scmp.ne.s32.totalorder %s118, %s119
    %p131 = scmp.eq.s32.totalorder %s20, 1
    %p132 = por %p130, %p131
    %p134 = scmp.ne.s32.totalorder %s119, %s133
    %p135 = scmp.eq.s32.totalorder %s20, 0
    %p136 = por %p134, %p135
    %s138 = sadd.s32 %s137, 1
    %p141 = scmp.eq.s32.totalorder %s14, 1
    %p142 = scmp.ne.s32.totalorder %s137, %s139
    %p143 = scmp.eq.s32.totalorder %s14, 0
    %p144 = por %p142, %p143
    %p145 = scmp.ne.s32.totalorder %s137, %s139
    %p146 = scmp.eq.s32.totalorder %s19, 1
    %p147 = por %p145, %p146
    %p148 = scmp.ne.s32.totalorder %s139, %s140
    %p149 = scmp.eq.s32.totalorder %s19, 0
    %p150 = por %p148, %p149
    %p151 = scmp.ne.s32.totalorder %s139, %s140
    %p152 = scmp.eq.s32.totalorder %s20, 1
    %p153 = por %p151, %p152
    %p155 = scmp.ne.s32.totalorder %s140, %s154
    %p156 = scmp.eq.s32.totalorder %s20, 0
    %p157 = por %p155, %p156
    %s159 = sadd.s32 %s158, 1
    %p162 = scmp.eq.s32.totalorder %s14, 1
    %p163 = scmp.ne.s32.totalorder %s158, %s160
    %p164 = scmp.eq.s32.totalorder %s14, 0
    %p165 = por %p163, %p164
    %p166 = scmp.ne.s32.totalorder %s158, %s160
    %p167 = scmp.eq.s32.totalorder %s19, 1
    %p168 = por %p166, %p167
    %p169 = scmp.ne.s32.totalorder %s160, %s161
    %p170 = scmp.eq.s32.totalorder %s19, 0
    %p171 = por %p169, %p170
    %p172 = scmp.ne.s32.totalorder %s160, %s161
    %p173 = scmp.eq.s32.totalorder %s20, 1
    %p174 = por %p172, %p173
    %p176 = scmp.ne.s32.totalorder %s161, %s175
    %p177 = scmp.eq.s32.totalorder %s20, 0
    %p178 = por %p176, %p177
    %s180 = sadd.s32 %s179, 1
    %p183 = scmp.eq.s32.totalorder %s14, 1
    %p184 = scmp.ne.s32.totalorder %s179, %s181
    %p185 = scmp.eq.s32.totalorder %s14, 0
    %p186 = por %p184, %p185
    %p187 = scmp.ne.s32.totalorder %s179, %s181
    %p188 = scmp.eq.s32.totalorder %s19, 1
    %p189 = por %p187, %p188
    %p190 = scmp.ne.s32.totalorder %s181, %s182
    %p191 = scmp.eq.s32.totalorder %s19, 0
    %p192 = por %p190, %p191
    %p193 = scmp.ne.s32.totalorder %s181, %s182
    %p194 = scmp.eq.s32.totalorder %s20, 1
    %p195 = por %p193, %p194
    %p197 = scmp.ne.s32.totalorder %s182, %s196
    %p198 = scmp.eq.s32.totalorder %s20, 0
    %p199 = por %p197, %p198
    %s200 = ssub.s32 %s14, %s21
    %p201 = scmp.eq.s32.totalorder %s200, 0
    %s203 = sadd.s32 %s202, 1
    %s204 = scalar_select %p201, %s202, %s203
    %p207 = pneg %p201
    %p208 = scmp.eq.s32.totalorder %s14, 1
    %p209 = por %p207, %p208
    %p210 = scmp.ne.s32.totalorder %s202, %s205
    %p211 = scmp.eq.s32.totalorder %s14, 0
    %p212 = por %p210, %p211
    %p213 = scmp.ne.s32.totalorder %s202, %s205
    %p214 = scmp.eq.s32.totalorder %s19, 1
    %p215 = por %p213, %p214
    %p216 = scmp.ne.s32.totalorder %s205, %s206
    %p217 = scmp.eq.s32.totalorder %s19, 0
    %p218 = por %p216, %p217
    %p219 = scmp.ne.s32.totalorder %s205, %s206
    %p220 = scmp.eq.s32.totalorder %s20, 1
    %p221 = por %p219, %p220
    %p223 = scmp.ne.s32.totalorder %s206, %s222
    %p224 = scmp.eq.s32.totalorder %s20, 0
    %p225 = por %p223, %p224
    %p226 = scmp.le.s32.totalorder 1, %s14
    %p227 = scmp.lt.s32.totalorder %s14, 3
    %p228 = pnand %p226, %p227
    %p229 = pneg %p228
    // Predicated region
    $region9: #{basic_block_pallas.1} parent=5 // pred_check
      _
    $region10: #{basic_block_pallas.1} parent=5 // pred_check_branch
      %231 = sbr.rel (%p228) target = $region12
    $region11: #{basic_block_pallas.1} parent=5 // pred_region
      %s232 = ssub.s32 %s14, 1
      // Predicated region
      $region13: #{basic_block_pallas.1} parent=11 // pred_check
        %p233 = pneg %p87
      $region14: #{basic_block_pallas.1} parent=11 // pred_check_branch
        %235 = sbr.rel (%p233) target = $region16
      $region15: #{basic_block_pallas.1} parent=11 // pred_region
        _
      $region16: #{basic_block_pallas.1} parent=11 // pred_fallthru
        _
      // Predicated region
      $region17: #{basic_block_pallas.1} parent=11 // pred_check
        %p236 = pneg %p108
      $region18: #{basic_block_pallas.1} parent=11 // pred_check_branch
        %238 = sbr.rel (%p236) target = $region20
      $region19: #{basic_block_pallas.1} parent=11 // pred_region
        _
      $region20: #{basic_block_pallas.1} parent=11 // pred_fallthru
        _
      // Predicated region
      $region21: #{basic_block_pallas.1} parent=11 // pred_check
        %p239 = pneg %p129
      $region22: #{basic_block_pallas.1} parent=11 // pred_check_branch
        %241 = sbr.rel (%p239) target = $region24
      $region23: #{basic_block_pallas.1} parent=11 // pred_region
        _
      $region24: #{basic_block_pallas.1} parent=11 // pred_fallthru
        _
      // Predicated region
      $region25: #{basic_block_pallas.1} parent=11 // pred_check
        %p242 = pneg %p150
      $region26: #{basic_block_pallas.1} parent=11 // pred_check_branch
        %244 = sbr.rel (%p242) target = $region28
      $region27: #{basic_block_pallas.1} parent=11 // pred_region
        _
      $region28: #{basic_block_pallas.1} parent=11 // pred_fallthru
        _
      // Predicated region
      $region29: #{basic_block_pallas.1} parent=11 // pred_check
        %p245 = pneg %p171
      $region30: #{basic_block_pallas.1} parent=11 // pred_check_branch
        %247 = sbr.rel (%p245) target = $region32
      $region31: #{basic_block_pallas.1} parent=11 // pred_region
        _
      $region32: #{basic_block_pallas.1} parent=11 // pred_fallthru
        _
      // Predicated region
      $region33: #{basic_block_pallas.1} parent=11 // pred_check
        %p248 = pneg %p192
      $region34: #{basic_block_pallas.1} parent=11 // pred_check_branch
        %250 = sbr.rel (%p248) target = $region36
      $region35: #{basic_block_pallas.1} parent=11 // pred_region
        _
      $region36: #{basic_block_pallas.1} parent=11 // pred_fallthru
        _
    $region12: #{basic_block_pallas.1} parent=5 // pred_fallthru
      _
    %p251 = scmp.lt.s32.totalorder %s14, 2
    // Predicated region
    $region37: #{basic_block_pallas.1} parent=5 // pred_check
      %p252 = pneg %p251
    $region38: #{basic_block_pallas.1} parent=5 // pred_check_branch
      %254 = sbr.rel (%p252) target = $region40
    $region39: #{basic_block_pallas.1} parent=5 // pred_region
      // Predicated region
      $region41: #{basic_block_pallas.1} parent=39 // pred_check
        %p255 = pneg %p34
      $region42: #{basic_block_pallas.1} parent=39 // pred_check_branch
        %257 = sbr.rel (%p255) target = $region44
      $region43: #{basic_block_pallas.1} parent=39 // pred_region
        %p258 = scmp.lt.s32.totalorder %s14, 1
        %s259 = scalar_select %p258, %s14, 1
        %s260 = smul.addr %s259, 14
        %s261 = smul.addr %s260, 8
        %s262 = scalar_lea.vmem %s0, %s261
      $region44: #{basic_block_pallas.1} parent=39 // pred_fallthru
        _
      // Predicated region
      $region45: #{basic_block_pallas.1} parent=39 // pred_check
        %p263 = pneg %p60
      $region46: #{basic_block_pallas.1} parent=39 // pred_check_branch
        %265 = sbr.rel (%p263) target = $region48
      $region47: #{basic_block_pallas.1} parent=39 // pred_region
        %p266 = scmp.lt.s32.totalorder %s14, 1
        %s267 = scalar_select %p266, %s14, 1
        %s268 = smul.addr %s267, 10
        %s269 = smul.addr %s268, 8
        %s270 = scalar_lea.vmem %s1, %s269
      $region48: #{basic_block_pallas.1} parent=39 // pred_fallthru
        _
    $region40: #{basic_block_pallas.1} parent=5 // pred_fallthru
      _
    %p271 = scmp.le.s32.totalorder 1, %s14
    %p272 = scmp.lt.s32.totalorder %s14, 3
    %p273 = pnand %p271, %p272
    %p274 = pneg %p273
    // Predicated region
    $region49: #{basic_block_pallas.1} parent=5 // pred_check
      _
    $region50: #{basic_block_pallas.1} parent=5 // pred_check_branch
      %276 = sbr.rel (%p273) target = $region52
    $region51: #{basic_block_pallas.1} parent=5 // pred_region
      %s277 = ssub.s32 %s14, 1
      %p278 = scmp.lt.s32.totalorder %s19, 1
      %s279 = scalar_select %p278, %s19, 1
      %s280 = smul.addr %s279, 14
      %s281 = smul.addr %s280, 8
      %s282 = scalar_lea.vmem %s0, %s281
      %p283 = pneg %p40
      %p284 = pneg %p37
      %p285 = scmp.lt.s32.totalorder %s19, 1
      %s286 = scalar_select %p285, %s19, 1
      %s287 = smul.addr %s286, 10
      %s288 = smul.addr %s287, 8
      %s289 = scalar_lea.vmem %s1, %s288
      %p290 = pneg %p66
      %p291 = pneg %p63
      %p292 = pneg %p87
      %p293 = pneg %p84
      %p294 = pneg %p108
      %p295 = pneg %p105
      %p296 = pneg %p129
      %p297 = pneg %p126
      %p298 = pneg %p150
      %p299 = pneg %p147
      %p300 = pneg %p171
      %p301 = pneg %p168
      %p302 = pneg %p192
      %p303 = pneg %p189
      %p304 = pneg %p218
      %p305 = pneg %p215
      %p306 = scmp.lt.s32.totalorder %s19, 1
      %s307 = scalar_select %p306, %s19, 1
      %s308 = smul.addr %s307, 10
      %s309 = smul.addr %s308, 8
      %s310 = scalar_lea.vmem %s8, %s309
      %p311 = scmp.lt.s32.totalorder %s19, 1
      %s312 = scalar_select %p311, %s19, 1
      %s313 = smul.addr %s312, 14
      %s314 = smul.addr %s313, 8
      %s315 = scalar_lea.vmem %s0, %s314
      %p316 = scmp.lt.s32.totalorder %s19, 1
      %s317 = scalar_select %p316, %s19, 1
      %s318 = smul.addr %s317, 10
      %s319 = smul.addr %s318, 8
      %s320 = scalar_lea.vmem %s1, %s319
      %p321 = scmp.lt.s32.totalorder %s19, 1
      %s322 = scalar_select %p321, %s19, 1
      %s323 = smul.addr %s322, 10
      %s324 = smul.addr %s323, 8
      %s325 = scalar_lea.vmem %s8, %s324
      %v326 = vld [vmem:[%s315] sm:$0xff]
      %v327 = vld [vmem:[%s315 + $0x8] sm:$0xff]
      %v328 = vld [vmem:[%s315 + $0x10] sm:$0xff]
      %v329 = vld [vmem:[%s315 + $0x18] sm:$0xff]
      %v330 = vld [vmem:[%s315 + $0x20] sm:$0xff]
      %v331 = vld [vmem:[%s315 + $0x28] sm:$0xff]
      %v332 = vld [vmem:[%s315 + $0x30] sm:$0xff]
      %v333 = vld [vmem:[%s315 + $0x38] sm:$0xff]
      %v334 = vld [vmem:[%s315 + $0x40] sm:$0xff]
      %v335 = vld [vmem:[%s315 + $0x48] sm:$0xff]
      %v336 = vld [vmem:[%s315 + $0x50] sm:$0xff]
      %v337 = vld [vmem:[%s315 + $0x58] sm:$0xff]
      %v338 = vld [vmem:[%s315 + $0x60] sm:$0xff]
      %v339 = vld [vmem:[%s315 + $0x68] sm:$0xff]
      %v340 = vld [vmem:[%s2] sm:$0xff]
      %v341 = vld [vmem:[%s2 + $0x8] sm:$0xff]
      %v342 = vld [vmem:[%s2 + $0x10] sm:$0xff]
      %v343 = vld [vmem:[%s2 + $0x18] sm:$0xff]
      %v344 = vld [vmem:[%s2 + $0x20] sm:$0xff]
      %v345 = vld [vmem:[%s2 + $0x28] sm:$0xff]
      %v346 = vld [vmem:[%s2 + $0x30] sm:$0xff]
      %v347 = vld [vmem:[%s2 + $0x38] sm:$0xff]
      %v348 = vld [vmem:[%s2 + $0x40] sm:$0xff]
      %v349 = vld [vmem:[%s2 + $0x48] sm:$0xff]
      %v350 = vld [vmem:[%s2 + $0x50] sm:$0xff]
      %v351 = vld [vmem:[%s2 + $0x58] sm:$0xff]
      %v352 = vld [vmem:[%s2 + $0x60] sm:$0xff]
      %v353 = vld [vmem:[%s2 + $0x68] sm:$0xff]
      %v354 = vld [vmem:[%s2 + $0x70] sm:$0xff]
      %v355 = vld [vmem:[%s2 + $0x78] sm:$0xff]
      %356 = vmatprep.subr.mxu0 0.0
      %357 = vmatpush1.msra.mxu0 %v355
      %358 = vmatprep.subr.mxu0 0.0
      %359 = vmatpush1.msra.mxu0 %v354
      %360 = vmatprep.subr.mxu0 0.0
      %361 = vmatpush1.msra.mxu0 %v353
      %362 = vmatprep.subr.mxu0 0.0
      %363 = vmatpush1.msra.mxu0 %v352
      %364 = vmatprep.subr.mxu0 0.0
      %365 = vmatpush1.msra.mxu0 %v351
      %366 = vmatprep.subr.mxu0 0.0
      %367 = vmatpush1.msra.mxu0 %v350
      %368 = vmatprep.subr.mxu0 0.0
      %369 = vmatpush1.msra.mxu0 %v349
      %370 = vmatprep.subr.mxu0 0.0
      %371 = vmatpush1.msra.mxu0 %v348
      %372 = vmatprep.subr.mxu0 0.0
      %373 = vmatpush1.msra.mxu0 %v347
      %374 = vmatprep.subr.mxu0 0.0
      %375 = vmatpush1.msra.mxu0 %v346
      %376 = vmatprep.subr.mxu0 0.0
      %377 = vmatpush1.msra.mxu0 %v345
      %378 = vmatprep.subr.mxu0 0.0
      %379 = vmatpush1.msra.mxu0 %v344
      %380 = vmatprep.subr.mxu0 0.0
      %381 = vmatpush1.msra.mxu0 %v343
      %382 = vmatprep.subr.mxu0 0.0
      %383 = vmatpush1.msra.mxu0 %v342
      %384 = vmatprep.subr.mxu0 0.0
      %385 = vmatpush1.msra.mxu0 %v341
      %386 = vmatprep.subr.mxu0 0.0
      %387 = vmatpush1.msra.mxu0 %v340
      %388 = vmatprep.subr.mxu0 0.0
      %389 = vmatpush2.msra.mxu0 0.0
      %390 = vmatprep.subr.mxu0 0.0
      %391 = vmatpush2.msra.mxu0 0.0
      %392 = vmatprep.subr.mxu0 0.0
      %393 = vmatpush2.msra.mxu0 0.0
      %394 = vmatprep.subr.mxu0 0.0
      %395 = vmatpush2.msra.mxu0 0.0
      %396 = vmatprep.subr.mxu0 0.0
      %397 = vmatpush2.msra.mxu0 0.0
      %398 = vmatprep.subr.mxu0 0.0
      %399 = vmatpush2.msra.mxu0 0.0
      %400 = vmatprep.subr.mxu0 0.0
      %401 = vmatpush2.msra.mxu0 0.0
      %402 = vmatprep.subr.mxu0 0.0
      %403 = vmatpush2.msra.mxu0 0.0
      %404 = vmatprep.subr.mxu0 0.0
      %405 = vmatpush2.msra.mxu0 0.0
      %406 = vmatprep.subr.mxu0 0.0
      %407 = vmatpush2.msra.mxu0 0.0
      %408 = vmatprep.subr.mxu0 0.0
      %409 = vmatpush2.msra.mxu0 0.0
      %410 = vmatprep.subr.mxu0 0.0
      %411 = vmatpush2.msra.mxu0 0.0
      %412 = vmatprep.subr.mxu0 0.0
      %413 = vmatpush2.msra.mxu0 0.0
      %414 = vmatprep.subr.mxu0 0.0
      %415 = vmatpush2.msra.mxu0 0.0
      %416 = vmatprep.subr.mxu0 0.0
      %417 = vmatpush2.msra.mxu0 0.0
      %418 = vmatprep.subr.mxu0 0.0
      %419 = vmatpush2.msra.mxu0 0.0
      %420 = vmatprep.mubr.f32.mxu0 0.0
      %421 = vmatmul.mubr.f32.gmra.mxu0 %v326
      %v422 = vpop.f32.mrf.mxu0
      %v423 = vadd.f32 0.0, %v422
      %v424 = vpop.f32.mrf.mxu0
      %425 = vmatprep.mubr.f32.mxu0 0.0
      %426 = vmatmul.mubr.f32.gmra.mxu0 %v327
      %v427 = vpop.f32.mrf.mxu0
      %v428 = vadd.f32 0.0, %v427
      %v429 = vpop.f32.mrf.mxu0
      %430 = vmatprep.mubr.f32.mxu0 0.0
      %431 = vmatmul.mubr.f32.gmra.mxu0 %v328
      %v432 = vpop.f32.mrf.mxu0
      %v433 = vadd.f32 0.0, %v432
      %v434 = vpop.f32.mrf.mxu0
      %435 = vmatprep.mubr.f32.mxu0 0.0
      %436 = vmatmul.mubr.f32.gmra.mxu0 %v329
      %v437 = vpop.f32.mrf.mxu0
      %v438 = vadd.f32 0.0, %v437
      %v439 = vpop.f32.mrf.mxu0
      %440 = vmatprep.mubr.f32.mxu0 0.0
      %441 = vmatmul.mubr.f32.gmra.mxu0 %v330
      %v442 = vpop.f32.mrf.mxu0
      %v443 = vadd.f32 0.0, %v442
      %v444 = vpop.f32.mrf.mxu0
      %445 = vmatprep.mubr.f32.mxu0 0.0
      %446 = vmatmul.mubr.f32.gmra.mxu0 %v331
      %v447 = vpop.f32.mrf.mxu0
      %v448 = vadd.f32 0.0, %v447
      %v449 = vpop.f32.mrf.mxu0
      %450 = vmatprep.mubr.f32.mxu0 0.0
      %451 = vmatmul.mubr.f32.gmra.mxu0 %v332
      %v452 = vpop.f32.mrf.mxu0
      %v453 = vadd.f32 0.0, %v452
      %v454 = vpop.f32.mrf.mxu0
      %455 = vmatprep.mubr.f32.mxu0 0.0
      %456 = vmatmul.mubr.f32.gmra.mxu0 %v333
      %v457 = vpop.f32.mrf.mxu0
      %v458 = vadd.f32 0.0, %v457
      %v459 = vpop.f32.mrf.mxu0
      %460 = vmatprep.mubr.f32.mxu0 0.0
      %461 = vmatmul.mubr.f32.gmra.mxu0 %v334
      %v462 = vpop.f32.mrf.mxu0
      %v463 = vadd.f32 0.0, %v462
      %v464 = vpop.f32.mrf.mxu0
      %465 = vmatprep.mubr.f32.mxu0 0.0
      %466 = vmatmul.mubr.f32.gmra.mxu0 %v335
      %v467 = vpop.f32.mrf.mxu0
      %v468 = vadd.f32 0.0, %v467
      %v469 = vpop.f32.mrf.mxu0
      %470 = vmatprep.mubr.f32.mxu0 0.0
      %471 = vmatmul.mubr.f32.gmra.mxu0 %v336
      %v472 = vpop.f32.mrf.mxu0
      %v473 = vadd.f32 0.0, %v472
      %v474 = vpop.f32.mrf.mxu0
      %475 = vmatprep.mubr.f32.mxu0 0.0
      %476 = vmatmul.mubr.f32.gmra.mxu0 %v337
      %v477 = vpop.f32.mrf.mxu0
      %v478 = vadd.f32 0.0, %v477
      %v479 = vpop.f32.mrf.mxu0
      %480 = vmatprep.mubr.f32.mxu0 0.0
      %481 = vmatmul.mubr.f32.gmra.mxu0 %v338
      %v482 = vpop.f32.mrf.mxu0
      %v483 = vadd.f32 0.0, %v482
      %v484 = vpop.f32.mrf.mxu0
      %485 = vmatprep.mubr.f32.mxu0 0.0
      %486 = vmatmul.mubr.f32.gmra.mxu0 %v339
      %v487 = vpop.f32.mrf.mxu0
      %v488 = vadd.f32 0.0, %v487
      %v489 = vpop.f32.mrf.mxu0
      %490 = vdwg.mxu0
      %v491 = vld [vmem:[%s5] sm:$0x1]
      %v493 = vlaneseq
      %v494 = vshrl.u32 %v493, 7
      %v495 = vsub.s32 0, %v494
      %v496 = vrot.slane %v491, %v495
      %v498 = vmul.f32 %v423, %v496
      %v499 = vmul.f32 %v428, %v496
      %v500 = vmul.f32 %v433, %v496
      %v501 = vmul.f32 %v438, %v496
      %v502 = vmul.f32 %v443, %v496
      %v503 = vmul.f32 %v448, %v496
      %v504 = vmul.f32 %v453, %v496
      %v505 = vmul.f32 %v458, %v496
      %v506 = vmul.f32 %v463, %v496
      %v507 = vmul.f32 %v468, %v496
      %v508 = vmul.f32 %v473, %v496
      %v509 = vmul.f32 %v478, %v496
      %v510 = vmul.f32 %v483, %v496
      %v511 = vmul.f32 %v488, %v496
      %v512 = vld [vmem:[%s6] sm:$0x1]
      %v514 = vlaneseq
      %v515 = vshrl.u32 %v514, 7
      %v516 = vsub.s32 0, %v515
      %v517 = vrot.slane %v512, %v516
      %v519 = vadd.f32 %v498, %v517
      %v520 = vadd.f32 %v499, %v517
      %v521 = vadd.f32 %v500, %v517
      %v522 = vadd.f32 %v501, %v517
      %v523 = vadd.f32 %v502, %v517
      %v524 = vadd.f32 %v503, %v517
      %v525 = vadd.f32 %v504, %v517
      %v526 = vadd.f32 %v505, %v517
      %v527 = vadd.f32 %v506, %v517
      %v528 = vadd.f32 %v507, %v517
      %v529 = vadd.f32 %v508, %v517
      %v530 = vadd.f32 %v509, %v517
      %v531 = vadd.f32 %v510, %v517
      %v532 = vadd.f32 %v511, %v517
      %v533 = vmax.f32 %v519, 0.0
      %v534 = vmax.f32 %v520, 0.0
      %v535 = vmax.f32 %v521, 0.0
      %v536 = vmax.f32 %v522, 0.0
      %v537 = vmax.f32 %v523, 0.0
      %v538 = vmax.f32 %v524, 0.0
      %v539 = vmax.f32 %v525, 0.0
      %v540 = vmax.f32 %v526, 0.0
      %v541 = vmax.f32 %v527, 0.0
      %v542 = vmax.f32 %v528, 0.0
      %v543 = vmax.f32 %v529, 0.0
      %v544 = vmax.f32 %v530, 0.0
      %v545 = vmax.f32 %v531, 0.0
      %v546 = vmax.f32 %v532, 0.0
      %v547 = vld [vmem:[%s7] sm:$0xff]
      %v548 = vld [vmem:[%s7 + $0x8] sm:$0xff]
      %v549 = vld [vmem:[%s7 + $0x10] sm:$0xff]
      %v550 = vld [vmem:[%s7 + $0x18] sm:$0xff]
      %v551 = vld [vmem:[%s7 + $0x20] sm:$0xff]
      %v552 = vld [vmem:[%s7 + $0x28] sm:$0xff]
      %v553 = vld [vmem:[%s7 + $0x30] sm:$0xff]
      %v554 = vld [vmem:[%s7 + $0x38] sm:$0xff]
      %v555 = vld [vmem:[%s7 + $0x40] sm:$0xff]
      %v556 = vld [vmem:[%s7 + $0x48] sm:$0xff]
      %v557 = vld [vmem:[%s7 + $0x50] sm:$0xff]
      %v558 = vld [vmem:[%s7 + $0x58] sm:$0xff]
      %v559 = vld [vmem:[%s7 + $0x60] sm:$0xff]
      %v560 = vld [vmem:[%s7 + $0x68] sm:$0xff]
      %562 = vset.pattern.permute.xlu0 0
      %563 = vperm.xlu0 %562, %v547
      %v564 = vpop.permute.xlu0 %563
      %567 = vset.pattern.permute.xlu0 0
      %568 = vperm.xlu0 %567, %v548
      %v569 = vpop.permute.xlu0 %568
      %572 = vset.pattern.permute.xlu0 0
      %573 = vperm.xlu0 %572, %v549
      %v574 = vpop.permute.xlu0 %573
      %577 = vset.pattern.permute.xlu0 0
      %578 = vperm.xlu0 %577, %v550
      %v579 = vpop.permute.xlu0 %578
      %582 = vset.pattern.permute.xlu0 0
      %583 = vperm.xlu0 %582, %v551
      %v584 = vpop.permute.xlu0 %583
      %587 = vset.pattern.permute.xlu0 0
      %588 = vperm.xlu0 %587, %v552
      %v589 = vpop.permute.xlu0 %588
      %592 = vset.pattern.permute.xlu0 0
      %593 = vperm.xlu0 %592, %v553
      %v594 = vpop.permute.xlu0 %593
      %597 = vset.pattern.permute.xlu0 0
      %598 = vperm.xlu0 %597, %v554
      %v599 = vpop.permute.xlu0 %598
      %602 = vset.pattern.permute.xlu0 0
      %603 = vperm.xlu0 %602, %v555
      %v604 = vpop.permute.xlu0 %603
      %607 = vset.pattern.permute.xlu0 0
      %608 = vperm.xlu0 %607, %v556
      %v609 = vpop.permute.xlu0 %608
      %612 = vset.pattern.permute.xlu0 0
      %613 = vperm.xlu0 %612, %v557
      %v614 = vpop.permute.xlu0 %613
      %617 = vset.pattern.permute.xlu0 0
      %618 = vperm.xlu0 %617, %v558
      %v619 = vpop.permute.xlu0 %618
      %622 = vset.pattern.permute.xlu0 0
      %623 = vperm.xlu0 %622, %v559
      %v624 = vpop.permute.xlu0 %623
      %627 = vset.pattern.permute.xlu0 0
      %628 = vperm.xlu0 %627, %v560
      %v629 = vpop.permute.xlu0 %628
      %v631 = vmul.f32 %v533, %v564
      %v632 = vmul.f32 %v534, %v569
      %v633 = vmul.f32 %v535, %v574
      %v634 = vmul.f32 %v536, %v579
      %v635 = vmul.f32 %v537, %v584
      %v636 = vmul.f32 %v538, %v589
      %v637 = vmul.f32 %v539, %v594
      %v638 = vmul.f32 %v540, %v599
      %v639 = vmul.f32 %v541, %v604
      %v640 = vmul.f32 %v542, %v609
      %v641 = vmul.f32 %v543, %v614
      %v642 = vmul.f32 %v544, %v619
      %v643 = vmul.f32 %v545, %v624
      %v644 = vmul.f32 %v546, %v629
      %645 = vst [vmem:[#allocation2] sm:$0xff] %v631
      %646 = vst [vmem:[#allocation2 + $0x8] sm:$0xff] %v632
      %647 = vst [vmem:[#allocation2 + $0x10] sm:$0xff] %v633
      %648 = vst [vmem:[#allocation2 + $0x18] sm:$0xff] %v634
      %649 = vst [vmem:[#allocation2 + $0x20] sm:$0xff] %v635
      %650 = vst [vmem:[#allocation2 + $0x28] sm:$0xff] %v636
      %651 = vst [vmem:[#allocation2 + $0x30] sm:$0xff] %v637
      %652 = vst [vmem:[#allocation2 + $0x38] sm:$0xff] %v638
      %653 = vst [vmem:[#allocation2 + $0x40] sm:$0xff] %v639
      %654 = vst [vmem:[#allocation2 + $0x48] sm:$0xff] %v640
      %655 = vst [vmem:[#allocation2 + $0x50] sm:$0xff] %v641
      %656 = vst [vmem:[#allocation2 + $0x58] sm:$0xff] %v642
      %657 = vst [vmem:[#allocation2 + $0x60] sm:$0xff] %v643
      %658 = vst [vmem:[#allocation2 + $0x68] sm:$0xff] %v644
      %v659 = vld [vmem:[#allocation2] sm:$0xff]
      %v660 = vld [vmem:[#allocation2 + $0x8] sm:$0xff]
      %v661 = vld [vmem:[#allocation2 + $0x10] sm:$0xff]
      %v662 = vld [vmem:[#allocation2 + $0x18] sm:$0xff]
      %v663 = vld [vmem:[#allocation2 + $0x20] sm:$0xff]
      %v664 = vld [vmem:[#allocation2 + $0x28] sm:$0xff]
      %v665 = vld [vmem:[#allocation2 + $0x30] sm:$0xff]
      %v666 = vld [vmem:[#allocation2 + $0x38] sm:$0xff]
      %v667 = vld [vmem:[#allocation2 + $0x40] sm:$0xff]
      %v668 = vld [vmem:[#allocation2 + $0x48] sm:$0xff]
      %v669 = vld [vmem:[%s3] sm:$0xff]
      %v670 = vld [vmem:[%s3 + $0x8] sm:$0xff]
      %v671 = vld [vmem:[%s3 + $0x10] sm:$0xff]
      %v672 = vld [vmem:[%s3 + $0x18] sm:$0xff]
      %v673 = vld [vmem:[%s3 + $0x20] sm:$0xff]
      %v674 = vld [vmem:[%s3 + $0x28] sm:$0xff]
      %v675 = vld [vmem:[%s3 + $0x30] sm:$0xff]
      %v676 = vld [vmem:[%s3 + $0x38] sm:$0xff]
      %v677 = vld [vmem:[%s3 + $0x40] sm:$0xff]
      %v678 = vld [vmem:[%s3 + $0x48] sm:$0xff]
      %v679 = vld [vmem:[%s3 + $0x50] sm:$0xff]
      %v680 = vld [vmem:[%s3 + $0x58] sm:$0xff]
      %v681 = vld [vmem:[%s3 + $0x60] sm:$0xff]
      %v682 = vld [vmem:[%s3 + $0x68] sm:$0xff]
      %v683 = vld [vmem:[%s3 + $0x70] sm:$0xff]
      %v684 = vld [vmem:[%s3 + $0x78] sm:$0xff]
      %v685 = vld [vmem:[#allocation2 + $0x1] sm:$0xff]
      %v686 = vld [vmem:[#allocation2 + $0x9] sm:$0xff]
      %v687 = vld [vmem:[#allocation2 + $0x11] sm:$0xff]
      %v688 = vld [vmem:[#allocation2 + $0x19] sm:$0xff]
      %v689 = vld [vmem:[#allocation2 + $0x21] sm:$0xff]
      %v690 = vld [vmem:[#allocation2 + $0x29] sm:$0xff]
      %v691 = vld [vmem:[#allocation2 + $0x31] sm:$0xff]
      %v692 = vld [vmem:[#allocation2 + $0x39] sm:$0xff]
      %v693 = vld [vmem:[#allocation2 + $0x41] sm:$0xff]
      %v694 = vld [vmem:[#allocation2 + $0x49] sm:$0xff]
      %s695 = scalar_lea.vmem %s3, 128
      %v696 = vld [vmem:[%s695] sm:$0xff]
      %v697 = vld [vmem:[%s695 + $0x8] sm:$0xff]
      %v698 = vld [vmem:[%s695 + $0x10] sm:$0xff]
      %v699 = vld [vmem:[%s695 + $0x18] sm:$0xff]
      %v700 = vld [vmem:[%s695 + $0x20] sm:$0xff]
      %v701 = vld [vmem:[%s695 + $0x28] sm:$0xff]
      %v702 = vld [vmem:[%s695 + $0x30] sm:$0xff]
      %v703 = vld [vmem:[%s695 + $0x38] sm:$0xff]
      %v704 = vld [vmem:[%s695 + $0x40] sm:$0xff]
      %v705 = vld [vmem:[%s695 + $0x48] sm:$0xff]
      %v706 = vld [vmem:[%s695 + $0x50] sm:$0xff]
      %v707 = vld [vmem:[%s695 + $0x58] sm:$0xff]
      %v708 = vld [vmem:[%s695 + $0x60] sm:$0xff]
      %v709 = vld [vmem:[%s695 + $0x68] sm:$0xff]
      %v710 = vld [vmem:[%s695 + $0x70] sm:$0xff]
      %v711 = vld [vmem:[%s695 + $0x78] sm:$0xff]
      %712 = vmatprep.subr.mxu0 0.0
      %713 = vmatpush1.msra.mxu0 %v711
      %714 = vmatprep.subr.mxu0 0.0
      %715 = vmatpush1.msra.mxu0 %v710
      %716 = vmatprep.subr.mxu0 0.0
      %717 = vmatpush1.msra.mxu0 %v709
      %718 = vmatprep.subr.mxu0 0.0
      %719 = vmatpush1.msra.mxu0 %v708
      %720 = vmatprep.subr.mxu0 0.0
      %721 = vmatpush1.msra.mxu0 %v707
      %722 = vmatprep.subr.mxu0 0.0
      %723 = vmatpush1.msra.mxu0 %v706
      %724 = vmatprep.subr.mxu0 0.0
      %725 = vmatpush1.msra.mxu0 %v705
      %726 = vmatprep.subr.mxu0 0.0
      %727 = vmatpush1.msra.mxu0 %v704
      %728 = vmatprep.subr.mxu0 0.0
      %729 = vmatpush1.msra.mxu0 %v703
      %730 = vmatprep.subr.mxu0 0.0
      %731 = vmatpush1.msra.mxu0 %v702
      %732 = vmatprep.subr.mxu0 0.0
      %733 = vmatpush1.msra.mxu0 %v701
      %734 = vmatprep.subr.mxu0 0.0
      %735 = vmatpush1.msra.mxu0 %v700
      %736 = vmatprep.subr.mxu0 0.0
      %737 = vmatpush1.msra.mxu0 %v699
      %738 = vmatprep.subr.mxu0 0.0
      %739 = vmatpush1.msra.mxu0 %v698
      %740 = vmatprep.subr.mxu0 0.0
      %741 = vmatpush1.msra.mxu0 %v697
      %742 = vmatprep.subr.mxu0 0.0
      %743 = vmatpush1.msra.mxu0 %v696
      %744 = vmatprep.subr.mxu0 0.0
      %745 = vmatpush2.msra.mxu0 0.0
      %746 = vmatprep.subr.mxu0 0.0
      %747 = vmatpush2.msra.mxu0 0.0
      %748 = vmatprep.subr.mxu0 0.0
      %749 = vmatpush2.msra.mxu0 0.0
      %750 = vmatprep.subr.mxu0 0.0
      %751 = vmatpush2.msra.mxu0 0.0
      %752 = vmatprep.subr.mxu0 0.0
      %753 = vmatpush2.msra.mxu0 0.0
      %754 = vmatprep.subr.mxu0 0.0
      %755 = vmatpush2.msra.mxu0 0.0
      %756 = vmatprep.subr.mxu0 0.0
      %757 = vmatpush2.msra.mxu0 0.0
      %758 = vmatprep.subr.mxu0 0.0
      %759 = vmatpush2.msra.mxu0 0.0
      %760 = vmatprep.subr.mxu0 0.0
      %761 = vmatpush2.msra.mxu0 0.0
      %762 = vmatprep.subr.mxu0 0.0
      %763 = vmatpush2.msra.mxu0 0.0
      %764 = vmatprep.subr.mxu0 0.0
      %765 = vmatpush2.msra.mxu0 0.0
      %766 = vmatprep.subr.mxu0 0.0
      %767 = vmatpush2.msra.mxu0 0.0
      %768 = vmatprep.subr.mxu0 0.0
      %769 = vmatpush2.msra.mxu0 0.0
      %770 = vmatprep.subr.mxu0 0.0
      %771 = vmatpush2.msra.mxu0 0.0
      %772 = vmatprep.subr.mxu0 0.0
      %773 = vmatpush2.msra.mxu0 0.0
      %774 = vmatprep.subr.mxu0 0.0
      %775 = vmatpush2.msra.mxu0 0.0
      %776 = vmatprep.mubr.f32.mxu0 0.0
      %777 = vmatmul.mubr.f32.gmra.mxu0 %v685
      %v778 = vpop.f32.mrf.mxu0
      %v779 = vadd.f32 0.0, %v778
      %v780 = vpop.f32.mrf.mxu0
      %781 = vmatprep.mubr.f32.mxu0 0.0
      %782 = vmatmul.mubr.f32.gmra.mxu0 %v686
      %v783 = vpop.f32.mrf.mxu0
      %v784 = vadd.f32 0.0, %v783
      %v785 = vpop.f32.mrf.mxu0
      %786 = vmatprep.mubr.f32.mxu0 0.0
      %787 = vmatmul.mubr.f32.gmra.mxu0 %v687
      %v788 = vpop.f32.mrf.mxu0
      %v789 = vadd.f32 0.0, %v788
      %v790 = vpop.f32.mrf.mxu0
      %791 = vmatprep.mubr.f32.mxu0 0.0
      %792 = vmatmul.mubr.f32.gmra.mxu0 %v688
      %v793 = vpop.f32.mrf.mxu0
      %v794 = vadd.f32 0.0, %v793
      %v795 = vpop.f32.mrf.mxu0
      %796 = vmatprep.mubr.f32.mxu0 0.0
      %797 = vmatmul.mubr.f32.gmra.mxu0 %v689
      %v798 = vpop.f32.mrf.mxu0
      %v799 = vadd.f32 0.0, %v798
      %v800 = vpop.f32.mrf.mxu0
      %801 = vmatprep.mubr.f32.mxu0 0.0
      %802 = vmatmul.mubr.f32.gmra.mxu0 %v690
      %v803 = vpop.f32.mrf.mxu0
      %v804 = vadd.f32 0.0, %v803
      %v805 = vpop.f32.mrf.mxu0
      %806 = vmatprep.mubr.f32.mxu0 0.0
      %807 = vmatmul.mubr.f32.gmra.mxu0 %v691
      %v808 = vpop.f32.mrf.mxu0
      %v809 = vadd.f32 0.0, %v808
      %v810 = vpop.f32.mrf.mxu0
      %811 = vmatprep.mubr.f32.mxu0 0.0
      %812 = vmatmul.mubr.f32.gmra.mxu0 %v692
      %v813 = vpop.f32.mrf.mxu0
      %v814 = vadd.f32 0.0, %v813
      %v815 = vpop.f32.mrf.mxu0
      %816 = vmatprep.mubr.f32.mxu0 0.0
      %817 = vmatmul.mubr.f32.gmra.mxu0 %v693
      %v818 = vpop.f32.mrf.mxu0
      %v819 = vadd.f32 0.0, %v818
      %v820 = vpop.f32.mrf.mxu0
      %821 = vmatprep.mubr.f32.mxu0 0.0
      %822 = vmatmul.mubr.f32.gmra.mxu0 %v694
      %v823 = vpop.f32.mrf.mxu0
      %v824 = vadd.f32 0.0, %v823
      %v825 = vpop.f32.mrf.mxu0
      %826 = vdwg.mxu0
      %827 = vmatprep.subr.mxu0 0.0
      %828 = vmatpush1.msra.mxu0 %v684
      %829 = vmatprep.subr.mxu0 0.0
      %830 = vmatpush1.msra.mxu0 %v683
      %831 = vmatprep.subr.mxu0 0.0
      %832 = vmatpush1.msra.mxu0 %v682
      %833 = vmatprep.subr.mxu0 0.0
      %834 = vmatpush1.msra.mxu0 %v681
      %835 = vmatprep.subr.mxu0 0.0
      %836 = vmatpush1.msra.mxu0 %v680
      %837 = vmatprep.subr.mxu0 0.0
      %838 = vmatpush1.msra.mxu0 %v679
      %839 = vmatprep.subr.mxu0 0.0
      %840 = vmatpush1.msra.mxu0 %v678
      %841 = vmatprep.subr.mxu0 0.0
      %842 = vmatpush1.msra.mxu0 %v677
      %843 = vmatprep.subr.mxu0 0.0
      %844 = vmatpush1.msra.mxu0 %v676
      %845 = vmatprep.subr.mxu0 0.0
      %846 = vmatpush1.msra.mxu0 %v675
      %847 = vmatprep.subr.mxu0 0.0
      %848 = vmatpush1.msra.mxu0 %v674
      %849 = vmatprep.subr.mxu0 0.0
      %850 = vmatpush1.msra.mxu0 %v673
      %851 = vmatprep.subr.mxu0 0.0
      %852 = vmatpush1.msra.mxu0 %v672
      %853 = vmatprep.subr.mxu0 0.0
      %854 = vmatpush1.msra.mxu0 %v671
      %855 = vmatprep.subr.mxu0 0.0
      %856 = vmatpush1.msra.mxu0 %v670
      %857 = vmatprep.subr.mxu0 0.0
      %858 = vmatpush1.msra.mxu0 %v669
      %859 = vmatprep.subr.mxu0 0.0
      %860 = vmatpush2.msra.mxu0 0.0
      %861 = vmatprep.subr.mxu0 0.0
      %862 = vmatpush2.msra.mxu0 0.0
      %863 = vmatprep.subr.mxu0 0.0
      %864 = vmatpush2.msra.mxu0 0.0
      %865 = vmatprep.subr.mxu0 0.0
      %866 = vmatpush2.msra.mxu0 0.0
      %867 = vmatprep.subr.mxu0 0.0
      %868 = vmatpush2.msra.mxu0 0.0
      %869 = vmatprep.subr.mxu0 0.0
      %870 = vmatpush2.msra.mxu0 0.0
      %871 = vmatprep.subr.mxu0 0.0
      %872 = vmatpush2.msra.mxu0 0.0
      %873 = vmatprep.subr.mxu0 0.0
      %874 = vmatpush2.msra.mxu0 0.0
      %875 = vmatprep.subr.mxu0 0.0
      %876 = vmatpush2.msra.mxu0 0.0
      %877 = vmatprep.subr.mxu0 0.0
      %878 = vmatpush2.msra.mxu0 0.0
      %879 = vmatprep.subr.mxu0 0.0
      %880 = vmatpush2.msra.mxu0 0.0
      %881 = vmatprep.subr.mxu0 0.0
      %882 = vmatpush2.msra.mxu0 0.0
      %883 = vmatprep.subr.mxu0 0.0
      %884 = vmatpush2.msra.mxu0 0.0
      %885 = vmatprep.subr.mxu0 0.0
      %886 = vmatpush2.msra.mxu0 0.0
      %887 = vmatprep.subr.mxu0 0.0
      %888 = vmatpush2.msra.mxu0 0.0
      %889 = vmatprep.subr.mxu0 0.0
      %890 = vmatpush2.msra.mxu0 0.0
      %891 = vmatprep.mubr.f32.mxu0 0.0
      %892 = vmatmul.mubr.f32.gmra.mxu0 %v659
      %v893 = vpop.f32.mrf.mxu0
      %v894 = vadd.f32 %v779, %v893
      %v895 = vpop.f32.mrf.mxu0
      %896 = vmatprep.mubr.f32.mxu0 0.0
      %897 = vmatmul.mubr.f32.gmra.mxu0 %v660
      %v898 = vpop.f32.mrf.mxu0
      %v899 = vadd.f32 %v784, %v898
      %v900 = vpop.f32.mrf.mxu0
      %901 = vmatprep.mubr.f32.mxu0 0.0
      %902 = vmatmul.mubr.f32.gmra.mxu0 %v661
      %v903 = vpop.f32.mrf.mxu0
      %v904 = vadd.f32 %v789, %v903
      %v905 = vpop.f32.mrf.mxu0
      %906 = vmatprep.mubr.f32.mxu0 0.0
      %907 = vmatmul.mubr.f32.gmra.mxu0 %v662
      %v908 = vpop.f32.mrf.mxu0
      %v909 = vadd.f32 %v794, %v908
      %v910 = vpop.f32.mrf.mxu0
      %911 = vmatprep.mubr.f32.mxu0 0.0
      %912 = vmatmul.mubr.f32.gmra.mxu0 %v663
      %v913 = vpop.f32.mrf.mxu0
      %v914 = vadd.f32 %v799, %v913
      %v915 = vpop.f32.mrf.mxu0
      %916 = vmatprep.mubr.f32.mxu0 0.0
      %917 = vmatmul.mubr.f32.gmra.mxu0 %v664
      %v918 = vpop.f32.mrf.mxu0
      %v919 = vadd.f32 %v804, %v918
      %v920 = vpop.f32.mrf.mxu0
      %921 = vmatprep.mubr.f32.mxu0 0.0
      %922 = vmatmul.mubr.f32.gmra.mxu0 %v665
      %v923 = vpop.f32.mrf.mxu0
      %v924 = vadd.f32 %v809, %v923
      %v925 = vpop.f32.mrf.mxu0
      %926 = vmatprep.mubr.f32.mxu0 0.0
      %927 = vmatmul.mubr.f32.gmra.mxu0 %v666
      %v928 = vpop.f32.mrf.mxu0
      %v929 = vadd.f32 %v814, %v928
      %v930 = vpop.f32.mrf.mxu0
      %931 = vmatprep.mubr.f32.mxu0 0.0
      %932 = vmatmul.mubr.f32.gmra.mxu0 %v667
      %v933 = vpop.f32.mrf.mxu0
      %v934 = vadd.f32 %v819, %v933
      %v935 = vpop.f32.mrf.mxu0
      %936 = vmatprep.mubr.f32.mxu0 0.0
      %937 = vmatmul.mubr.f32.gmra.mxu0 %v668
      %v938 = vpop.f32.mrf.mxu0
      %v939 = vadd.f32 %v824, %v938
      %v940 = vpop.f32.mrf.mxu0
      %941 = vdwg.mxu0
      %v942 = vld [vmem:[#allocation2 + $0x2] sm:$0xff]
      %v943 = vld [vmem:[#allocation2 + $0xa] sm:$0xff]
      %v944 = vld [vmem:[#allocation2 + $0x12] sm:$0xff]
      %v945 = vld [vmem:[#allocation2 + $0x1a] sm:$0xff]
      %v946 = vld [vmem:[#allocation2 + $0x22] sm:$0xff]
      %v947 = vld [vmem:[#allocation2 + $0x2a] sm:$0xff]
      %v948 = vld [vmem:[#allocation2 + $0x32] sm:$0xff]
      %v949 = vld [vmem:[#allocation2 + $0x3a] sm:$0xff]
      %v950 = vld [vmem:[#allocation2 + $0x42] sm:$0xff]
      %v951 = vld [vmem:[#allocation2 + $0x4a] sm:$0xff]
      %s952 = scalar_lea.vmem %s3, 256
      %v953 = vld [vmem:[%s952] sm:$0xff]
      %v954 = vld [vmem:[%s952 + $0x8] sm:$0xff]
      %v955 = vld [vmem:[%s952 + $0x10] sm:$0xff]
      %v956 = vld [vmem:[%s952 + $0x18] sm:$0xff]
      %v957 = vld [vmem:[%s952 + $0x20] sm:$0xff]
      %v958 = vld [vmem:[%s952 + $0x28] sm:$0xff]
      %v959 = vld [vmem:[%s952 + $0x30] sm:$0xff]
      %v960 = vld [vmem:[%s952 + $0x38] sm:$0xff]
      %v961 = vld [vmem:[%s952 + $0x40] sm:$0xff]
      %v962 = vld [vmem:[%s952 + $0x48] sm:$0xff]
      %v963 = vld [vmem:[%s952 + $0x50] sm:$0xff]
      %v964 = vld [vmem:[%s952 + $0x58] sm:$0xff]
      %v965 = vld [vmem:[%s952 + $0x60] sm:$0xff]
      %v966 = vld [vmem:[%s952 + $0x68] sm:$0xff]
      %v967 = vld [vmem:[%s952 + $0x70] sm:$0xff]
      %v968 = vld [vmem:[%s952 + $0x78] sm:$0xff]
      %969 = vmatprep.subr.mxu0 0.0
      %970 = vmatpush1.msra.mxu0 %v968
      %971 = vmatprep.subr.mxu0 0.0
      %972 = vmatpush1.msra.mxu0 %v967
      %973 = vmatprep.subr.mxu0 0.0
      %974 = vmatpush1.msra.mxu0 %v966
      %975 = vmatprep.subr.mxu0 0.0
      %976 = vmatpush1.msra.mxu0 %v965
      %977 = vmatprep.subr.mxu0 0.0
      %978 = vmatpush1.msra.mxu0 %v964
      %979 = vmatprep.subr.mxu0 0.0
      %980 = vmatpush1.msra.mxu0 %v963
      %981 = vmatprep.subr.mxu0 0.0
      %982 = vmatpush1.msra.mxu0 %v962
      %983 = vmatprep.subr.mxu0 0.0
      %984 = vmatpush1.msra.mxu0 %v961
      %985 = vmatprep.subr.mxu0 0.0
      %986 = vmatpush1.msra.mxu0 %v960
      %987 = vmatprep.subr.mxu0 0.0
      %988 = vmatpush1.msra.mxu0 %v959
      %989 = vmatprep.subr.mxu0 0.0
      %990 = vmatpush1.msra.mxu0 %v958
      %991 = vmatprep.subr.mxu0 0.0
      %992 = vmatpush1.msra.mxu0 %v957
      %993 = vmatprep.subr.mxu0 0.0
      %994 = vmatpush1.msra.mxu0 %v956
      %995 = vmatprep.subr.mxu0 0.0
      %996 = vmatpush1.msra.mxu0 %v955
      %997 = vmatprep.subr.mxu0 0.0
      %998 = vmatpush1.msra.mxu0 %v954
      %999 = vmatprep.subr.mxu0 0.0
      %1000 = vmatpush1.msra.mxu0 %v953
      %1001 = vmatprep.subr.mxu0 0.0
      %1002 = vmatpush2.msra.mxu0 0.0
      %1003 = vmatprep.subr.mxu0 0.0
      %1004 = vmatpush2.msra.mxu0 0.0
      %1005 = vmatprep.subr.mxu0 0.0
      %1006 = vmatpush2.msra.mxu0 0.0
      %1007 = vmatprep.subr.mxu0 0.0
      %1008 = vmatpush2.msra.mxu0 0.0
      %1009 = vmatprep.subr.mxu0 0.0
      %1010 = vmatpush2.msra.mxu0 0.0
      %1011 = vmatprep.subr.mxu0 0.0
      %1012 = vmatpush2.msra.mxu0 0.0
      %1013 = vmatprep.subr.mxu0 0.0
      %1014 = vmatpush2.msra.mxu0 0.0
      %1015 = vmatprep.subr.mxu0 0.0
      %1016 = vmatpush2.msra.mxu0 0.0
      %1017 = vmatprep.subr.mxu0 0.0
      %1018 = vmatpush2.msra.mxu0 0.0
      %1019 = vmatprep.subr.mxu0 0.0
      %1020 = vmatpush2.msra.mxu0 0.0
      %1021 = vmatprep.subr.mxu0 0.0
      %1022 = vmatpush2.msra.mxu0 0.0
      %1023 = vmatprep.subr.mxu0 0.0
      %1024 = vmatpush2.msra.mxu0 0.0
      %1025 = vmatprep.subr.mxu0 0.0
      %1026 = vmatpush2.msra.mxu0 0.0
      %1027 = vmatprep.subr.mxu0 0.0
      %1028 = vmatpush2.msra.mxu0 0.0
      %1029 = vmatprep.subr.mxu0 0.0
      %1030 = vmatpush2.msra.mxu0 0.0
      %1031 = vmatprep.subr.mxu0 0.0
      %1032 = vmatpush2.msra.mxu0 0.0
      %1033 = vmatprep.mubr.f32.mxu0 0.0
      %1034 = vmatmul.mubr.f32.gmra.mxu0 %v942
      %v1035 = vpop.f32.mrf.mxu0
      %v1036 = vadd.f32 0.0, %v1035
      %v1037 = vpop.f32.mrf.mxu0
      %1038 = vmatprep.mubr.f32.mxu0 0.0
      %1039 = vmatmul.mubr.f32.gmra.mxu0 %v943
      %v1040 = vpop.f32.mrf.mxu0
      %v1041 = vadd.f32 0.0, %v1040
      %v1042 = vpop.f32.mrf.mxu0
      %1043 = vmatprep.mubr.f32.mxu0 0.0
      %1044 = vmatmul.mubr.f32.gmra.mxu0 %v944
      %v1045 = vpop.f32.mrf.mxu0
      %v1046 = vadd.f32 0.0, %v1045
      %v1047 = vpop.f32.mrf.mxu0
      %1048 = vmatprep.mubr.f32.mxu0 0.0
      %1049 = vmatmul.mubr.f32.gmra.mxu0 %v945
      %v1050 = vpop.f32.mrf.mxu0
      %v1051 = vadd.f32 0.0, %v1050
      %v1052 = vpop.f32.mrf.mxu0
      %1053 = vmatprep.mubr.f32.mxu0 0.0
      %1054 = vmatmul.mubr.f32.gmra.mxu0 %v946
      %v1055 = vpop.f32.mrf.mxu0
      %v1056 = vadd.f32 0.0, %v1055
      %v1057 = vpop.f32.mrf.mxu0
      %1058 = vmatprep.mubr.f32.mxu0 0.0
      %1059 = vmatmul.mubr.f32.gmra.mxu0 %v947
      %v1060 = vpop.f32.mrf.mxu0
      %v1061 = vadd.f32 0.0, %v1060
      %v1062 = vpop.f32.mrf.mxu0
      %1063 = vmatprep.mubr.f32.mxu0 0.0
      %1064 = vmatmul.mubr.f32.gmra.mxu0 %v948
      %v1065 = vpop.f32.mrf.mxu0
      %v1066 = vadd.f32 0.0, %v1065
      %v1067 = vpop.f32.mrf.mxu0
      %1068 = vmatprep.mubr.f32.mxu0 0.0
      %1069 = vmatmul.mubr.f32.gmra.mxu0 %v949
      %v1070 = vpop.f32.mrf.mxu0
      %v1071 = vadd.f32 0.0, %v1070
      %v1072 = vpop.f32.mrf.mxu0
      %1073 = vmatprep.mubr.f32.mxu0 0.0
      %1074 = vmatmul.mubr.f32.gmra.mxu0 %v950
      %v1075 = vpop.f32.mrf.mxu0
      %v1076 = vadd.f32 0.0, %v1075
      %v1077 = vpop.f32.mrf.mxu0
      %1078 = vmatprep.mubr.f32.mxu0 0.0
      %1079 = vmatmul.mubr.f32.gmra.mxu0 %v951
      %v1080 = vpop.f32.mrf.mxu0
      %v1081 = vadd.f32 0.0, %v1080
      %v1082 = vpop.f32.mrf.mxu0
      %1083 = vdwg.mxu0
      %v1084 = vadd.f32 %v894, %v1036
      %v1085 = vadd.f32 %v899, %v1041
      %v1086 = vadd.f32 %v904, %v1046
      %v1087 = vadd.f32 %v909, %v1051
      %v1088 = vadd.f32 %v914, %v1056
      %v1089 = vadd.f32 %v919, %v1061
      %v1090 = vadd.f32 %v924, %v1066
      %v1091 = vadd.f32 %v929, %v1071
      %v1092 = vadd.f32 %v934, %v1076
      %v1093 = vadd.f32 %v939, %v1081
      %v1094 = vld [vmem:[#allocation2 + $0xa] sm:$0xff]
      %v1095 = vld [vmem:[#allocation2 + $0x12] sm:$0xff]
      %v1096 = vld [vmem:[#allocation2 + $0x1a] sm:$0xff]
      %v1097 = vld [vmem:[#allocation2 + $0x22] sm:$0xff]
      %v1098 = vld [vmem:[#allocation2 + $0x2a] sm:$0xff]
      %v1099 = vld [vmem:[#allocation2 + $0x32] sm:$0xff]
      %v1100 = vld [vmem:[#allocation2 + $0x3a] sm:$0xff]
      %v1101 = vld [vmem:[#allocation2 + $0x42] sm:$0xff]
      %v1102 = vld [vmem:[#allocation2 + $0x4a] sm:$0xff]
      %v1103 = vld [vmem:[#allocation2 + $0x52] sm:$0xff]
      %s1104 = scalar_lea.vmem %s3, 384
      %v1105 = vld [vmem:[%s1104] sm:$0xff]
      %v1106 = vld [vmem:[%s1104 + $0x8] sm:$0xff]
      %v1107 = vld [vmem:[%s1104 + $0x10] sm:$0xff]
      %v1108 = vld [vmem:[%s1104 + $0x18] sm:$0xff]
      %v1109 = vld [vmem:[%s1104 + $0x20] sm:$0xff]
      %v1110 = vld [vmem:[%s1104 + $0x28] sm:$0xff]
      %v1111 = vld [vmem:[%s1104 + $0x30] sm:$0xff]
      %v1112 = vld [vmem:[%s1104 + $0x38] sm:$0xff]
      %v1113 = vld [vmem:[%s1104 + $0x40] sm:$0xff]
      %v1114 = vld [vmem:[%s1104 + $0x48] sm:$0xff]
      %v1115 = vld [vmem:[%s1104 + $0x50] sm:$0xff]
      %v1116 = vld [vmem:[%s1104 + $0x58] sm:$0xff]
      %v1117 = vld [vmem:[%s1104 + $0x60] sm:$0xff]
      %v1118 = vld [vmem:[%s1104 + $0x68] sm:$0xff]
      %v1119 = vld [vmem:[%s1104 + $0x70] sm:$0xff]
      %v1120 = vld [vmem:[%s1104 + $0x78] sm:$0xff]
      %1121 = vmatprep.subr.mxu0 0.0
      %1122 = vmatpush1.msra.mxu0 %v1120
      %1123 = vmatprep.subr.mxu0 0.0
      %1124 = vmatpush1.msra.mxu0 %v1119
      %1125 = vmatprep.subr.mxu0 0.0
      %1126 = vmatpush1.msra.mxu0 %v1118
      %1127 = vmatprep.subr.mxu0 0.0
      %1128 = vmatpush1.msra.mxu0 %v1117
      %1129 = vmatprep.subr.mxu0 0.0
      %1130 = vmatpush1.msra.mxu0 %v1116
      %1131 = vmatprep.subr.mxu0 0.0
      %1132 = vmatpush1.msra.mxu0 %v1115
      %1133 = vmatprep.subr.mxu0 0.0
      %1134 = vmatpush1.msra.mxu0 %v1114
      %1135 = vmatprep.subr.mxu0 0.0
      %1136 = vmatpush1.msra.mxu0 %v1113
      %1137 = vmatprep.subr.mxu0 0.0
      %1138 = vmatpush1.msra.mxu0 %v1112
      %1139 = vmatprep.subr.mxu0 0.0
      %1140 = vmatpush1.msra.mxu0 %v1111
      %1141 = vmatprep.subr.mxu0 0.0
      %1142 = vmatpush1.msra.mxu0 %v1110
      %1143 = vmatprep.subr.mxu0 0.0
      %1144 = vmatpush1.msra.mxu0 %v1109
      %1145 = vmatprep.subr.mxu0 0.0
      %1146 = vmatpush1.msra.mxu0 %v1108
      %1147 = vmatprep.subr.mxu0 0.0
      %1148 = vmatpush1.msra.mxu0 %v1107
      %1149 = vmatprep.subr.mxu0 0.0
      %1150 = vmatpush1.msra.mxu0 %v1106
      %1151 = vmatprep.subr.mxu0 0.0
      %1152 = vmatpush1.msra.mxu0 %v1105
      %1153 = vmatprep.subr.mxu0 0.0
      %1154 = vmatpush2.msra.mxu0 0.0
      %1155 = vmatprep.subr.mxu0 0.0
      %1156 = vmatpush2.msra.mxu0 0.0
      %1157 = vmatprep.subr.mxu0 0.0
      %1158 = vmatpush2.msra.mxu0 0.0
      %1159 = vmatprep.subr.mxu0 0.0
      %1160 = vmatpush2.msra.mxu0 0.0
      %1161 = vmatprep.subr.mxu0 0.0
      %1162 = vmatpush2.msra.mxu0 0.0
      %1163 = vmatprep.subr.mxu0 0.0
      %1164 = vmatpush2.msra.mxu0 0.0
      %1165 = vmatprep.subr.mxu0 0.0
      %1166 = vmatpush2.msra.mxu0 0.0
      %1167 = vmatprep.subr.mxu0 0.0
      %1168 = vmatpush2.msra.mxu0 0.0
      %1169 = vmatprep.subr.mxu0 0.0
      %1170 = vmatpush2.msra.mxu0 0.0
      %1171 = vmatprep.subr.mxu0 0.0
      %1172 = vmatpush2.msra.mxu0 0.0
      %1173 = vmatprep.subr.mxu0 0.0
      %1174 = vmatpush2.msra.mxu0 0.0
      %1175 = vmatprep.subr.mxu0 0.0
      %1176 = vmatpush2.msra.mxu0 0.0
      %1177 = vmatprep.subr.mxu0 0.0
      %1178 = vmatpush2.msra.mxu0 0.0
      %1179 = vmatprep.subr.mxu0 0.0
      %1180 = vmatpush2.msra.mxu0 0.0
      %1181 = vmatprep.subr.mxu0 0.0
      %1182 = vmatpush2.msra.mxu0 0.0
      %1183 = vmatprep.subr.mxu0 0.0
      %1184 = vmatpush2.msra.mxu0 0.0
      %1185 = vmatprep.mubr.f32.mxu0 0.0
      %1186 = vmatmul.mubr.f32.gmra.mxu0 %v1094
      %v1187 = vpop.f32.mrf.mxu0
      %v1188 = vadd.f32 0.0, %v1187
      %v1189 = vpop.f32.mrf.mxu0
      %1190 = vmatprep.mubr.f32.mxu0 0.0
      %1191 = vmatmul.mubr.f32.gmra.mxu0 %v1095
      %v1192 = vpop.f32.mrf.mxu0
      %v1193 = vadd.f32 0.0, %v1192
      %v1194 = vpop.f32.mrf.mxu0
      %1195 = vmatprep.mubr.f32.mxu0 0.0
      %1196 = vmatmul.mubr.f32.gmra.mxu0 %v1096
      %v1197 = vpop.f32.mrf.mxu0
      %v1198 = vadd.f32 0.0, %v1197
      %v1199 = vpop.f32.mrf.mxu0
      %1200 = vmatprep.mubr.f32.mxu0 0.0
      %1201 = vmatmul.mubr.f32.gmra.mxu0 %v1097
      %v1202 = vpop.f32.mrf.mxu0
      %v1203 = vadd.f32 0.0, %v1202
      %v1204 = vpop.f32.mrf.mxu0
      %1205 = vmatprep.mubr.f32.mxu0 0.0
      %1206 = vmatmul.mubr.f32.gmra.mxu0 %v1098
      %v1207 = vpop.f32.mrf.mxu0
      %v1208 = vadd.f32 0.0, %v1207
      %v1209 = vpop.f32.mrf.mxu0
      %1210 = vmatprep.mubr.f32.mxu0 0.0
      %1211 = vmatmul.mubr.f32.gmra.mxu0 %v1099
      %v1212 = vpop.f32.mrf.mxu0
      %v1213 = vadd.f32 0.0, %v1212
      %v1214 = vpop.f32.mrf.mxu0
      %1215 = vmatprep.mubr.f32.mxu0 0.0
      %1216 = vmatmul.mubr.f32.gmra.mxu0 %v1100
      %v1217 = vpop.f32.mrf.mxu0
      %v1218 = vadd.f32 0.0, %v1217
      %v1219 = vpop.f32.mrf.mxu0
      %1220 = vmatprep.mubr.f32.mxu0 0.0
      %1221 = vmatmul.mubr.f32.gmra.mxu0 %v1101
      %v1222 = vpop.f32.mrf.mxu0
      %v1223 = vadd.f32 0.0, %v1222
      %v1224 = vpop.f32.mrf.mxu0
      %1225 = vmatprep.mubr.f32.mxu0 0.0
      %1226 = vmatmul.mubr.f32.gmra.mxu0 %v1102
      %v1227 = vpop.f32.mrf.mxu0
      %v1228 = vadd.f32 0.0, %v1227
      %v1229 = vpop.f32.mrf.mxu0
      %1230 = vmatprep.mubr.f32.mxu0 0.0
      %1231 = vmatmul.mubr.f32.gmra.mxu0 %v1103
      %v1232 = vpop.f32.mrf.mxu0
      %v1233 = vadd.f32 0.0, %v1232
      %v1234 = vpop.f32.mrf.mxu0
      %1235 = vdwg.mxu0
      %v1236 = vadd.f32 %v1084, %v1188
      %v1237 = vadd.f32 %v1085, %v1193
      %v1238 = vadd.f32 %v1086, %v1198
      %v1239 = vadd.f32 %v1087, %v1203
      %v1240 = vadd.f32 %v1088, %v1208
      %v1241 = vadd.f32 %v1089, %v1213
      %v1242 = vadd.f32 %v1090, %v1218
      %v1243 = vadd.f32 %v1091, %v1223
      %v1244 = vadd.f32 %v1092, %v1228
      %v1245 = vadd.f32 %v1093, %v1233
      %v1246 = vld [vmem:[#allocation2 + $0xb] sm:$0xff]
      %v1247 = vld [vmem:[#allocation2 + $0x13] sm:$0xff]
      %v1248 = vld [vmem:[#allocation2 + $0x1b] sm:$0xff]
      %v1249 = vld [vmem:[#allocation2 + $0x23] sm:$0xff]
      %v1250 = vld [vmem:[#allocation2 + $0x2b] sm:$0xff]
      %v1251 = vld [vmem:[#allocation2 + $0x33] sm:$0xff]
      %v1252 = vld [vmem:[#allocation2 + $0x3b] sm:$0xff]
      %v1253 = vld [vmem:[#allocation2 + $0x43] sm:$0xff]
      %v1254 = vld [vmem:[#allocation2 + $0x4b] sm:$0xff]
      %v1255 = vld [vmem:[#allocation2 + $0x53] sm:$0xff]
      %s1256 = scalar_lea.vmem %s3, 512
      %v1257 = vld [vmem:[%s1256] sm:$0xff]
      %v1258 = vld [vmem:[%s1256 + $0x8] sm:$0xff]
      %v1259 = vld [vmem:[%s1256 + $0x10] sm:$0xff]
      %v1260 = vld [vmem:[%s1256 + $0x18] sm:$0xff]
      %v1261 = vld [vmem:[%s1256 + $0x20] sm:$0xff]
      %v1262 = vld [vmem:[%s1256 + $0x28] sm:$0xff]
      %v1263 = vld [vmem:[%s1256 + $0x30] sm:$0xff]
      %v1264 = vld [vmem:[%s1256 + $0x38] sm:$0xff]
      %v1265 = vld [vmem:[%s1256 + $0x40] sm:$0xff]
      %v1266 = vld [vmem:[%s1256 + $0x48] sm:$0xff]
      %v1267 = vld [vmem:[%s1256 + $0x50] sm:$0xff]
      %v1268 = vld [vmem:[%s1256 + $0x58] sm:$0xff]
      %v1269 = vld [vmem:[%s1256 + $0x60] sm:$0xff]
      %v1270 = vld [vmem:[%s1256 + $0x68] sm:$0xff]
      %v1271 = vld [vmem:[%s1256 + $0x70] sm:$0xff]
      %v1272 = vld [vmem:[%s1256 + $0x78] sm:$0xff]
      %1273 = vmatprep.subr.mxu0 0.0
      %1274 = vmatpush1.msra.mxu0 %v1272
      %1275 = vmatprep.subr.mxu0 0.0
      %1276 = vmatpush1.msra.mxu0 %v1271
      %1277 = vmatprep.subr.mxu0 0.0
      %1278 = vmatpush1.msra.mxu0 %v1270
      %1279 = vmatprep.subr.mxu0 0.0
      %1280 = vmatpush1.msra.mxu0 %v1269
      %1281 = vmatprep.subr.mxu0 0.0
      %1282 = vmatpush1.msra.mxu0 %v1268
      %1283 = vmatprep.subr.mxu0 0.0
      %1284 = vmatpush1.msra.mxu0 %v1267
      %1285 = vmatprep.subr.mxu0 0.0
      %1286 = vmatpush1.msra.mxu0 %v1266
      %1287 = vmatprep.subr.mxu0 0.0
      %1288 = vmatpush1.msra.mxu0 %v1265
      %1289 = vmatprep.subr.mxu0 0.0
      %1290 = vmatpush1.msra.mxu0 %v1264
      %1291 = vmatprep.subr.mxu0 0.0
      %1292 = vmatpush1.msra.mxu0 %v1263
      %1293 = vmatprep.subr.mxu0 0.0
      %1294 = vmatpush1.msra.mxu0 %v1262
      %1295 = vmatprep.subr.mxu0 0.0
      %1296 = vmatpush1.msra.mxu0 %v1261
      %1297 = vmatprep.subr.mxu0 0.0
      %1298 = vmatpush1.msra.mxu0 %v1260
      %1299 = vmatprep.subr.mxu0 0.0
      %1300 = vmatpush1.msra.mxu0 %v1259
      %1301 = vmatprep.subr.mxu0 0.0
      %1302 = vmatpush1.msra.mxu0 %v1258
      %1303 = vmatprep.subr.mxu0 0.0
      %1304 = vmatpush1.msra.mxu0 %v1257
      %1305 = vmatprep.subr.mxu0 0.0
      %1306 = vmatpush2.msra.mxu0 0.0
      %1307 = vmatprep.subr.mxu0 0.0
      %1308 = vmatpush2.msra.mxu0 0.0
      %1309 = vmatprep.subr.mxu0 0.0
      %1310 = vmatpush2.msra.mxu0 0.0
      %1311 = vmatprep.subr.mxu0 0.0
      %1312 = vmatpush2.msra.mxu0 0.0
      %1313 = vmatprep.subr.mxu0 0.0
      %1314 = vmatpush2.msra.mxu0 0.0
      %1315 = vmatprep.subr.mxu0 0.0
      %1316 = vmatpush2.msra.mxu0 0.0
      %1317 = vmatprep.subr.mxu0 0.0
      %1318 = vmatpush2.msra.mxu0 0.0
      %1319 = vmatprep.subr.mxu0 0.0
      %1320 = vmatpush2.msra.mxu0 0.0
      %1321 = vmatprep.subr.mxu0 0.0
      %1322 = vmatpush2.msra.mxu0 0.0
      %1323 = vmatprep.subr.mxu0 0.0
      %1324 = vmatpush2.msra.mxu0 0.0
      %1325 = vmatprep.subr.mxu0 0.0
      %1326 = vmatpush2.msra.mxu0 0.0
      %1327 = vmatprep.subr.mxu0 0.0
      %1328 = vmatpush2.msra.mxu0 0.0
      %1329 = vmatprep.subr.mxu0 0.0
      %1330 = vmatpush2.msra.mxu0 0.0
      %1331 = vmatprep.subr.mxu0 0.0
      %1332 = vmatpush2.msra.mxu0 0.0
      %1333 = vmatprep.subr.mxu0 0.0
      %1334 = vmatpush2.msra.mxu0 0.0
      %1335 = vmatprep.subr.mxu0 0.0
      %1336 = vmatpush2.msra.mxu0 0.0
      %1337 = vmatprep.mubr.f32.mxu0 0.0
      %1338 = vmatmul.mubr.f32.gmra.mxu0 %v1246
      %v1339 = vpop.f32.mrf.mxu0
      %v1340 = vadd.f32 0.0, %v1339
      %v1341 = vpop.f32.mrf.mxu0
      %1342 = vmatprep.mubr.f32.mxu0 0.0
      %1343 = vmatmul.mubr.f32.gmra.mxu0 %v1247
      %v1344 = vpop.f32.mrf.mxu0
      %v1345 = vadd.f32 0.0, %v1344
      %v1346 = vpop.f32.mrf.mxu0
      %1347 = vmatprep.mubr.f32.mxu0 0.0
      %1348 = vmatmul.mubr.f32.gmra.mxu0 %v1248
      %v1349 = vpop.f32.mrf.mxu0
      %v1350 = vadd.f32 0.0, %v1349
      %v1351 = vpop.f32.mrf.mxu0
      %1352 = vmatprep.mubr.f32.mxu0 0.0
      %1353 = vmatmul.mubr.f32.gmra.mxu0 %v1249
      %v1354 = vpop.f32.mrf.mxu0
      %v1355 = vadd.f32 0.0, %v1354
      %v1356 = vpop.f32.mrf.mxu0
      %1357 = vmatprep.mubr.f32.mxu0 0.0
      %1358 = vmatmul.mubr.f32.gmra.mxu0 %v1250
      %v1359 = vpop.f32.mrf.mxu0
      %v1360 = vadd.f32 0.0, %v1359
      %v1361 = vpop.f32.mrf.mxu0
      %1362 = vmatprep.mubr.f32.mxu0 0.0
      %1363 = vmatmul.mubr.f32.gmra.mxu0 %v1251
      %v1364 = vpop.f32.mrf.mxu0
      %v1365 = vadd.f32 0.0, %v1364
      %v1366 = vpop.f32.mrf.mxu0
      %1367 = vmatprep.mubr.f32.mxu0 0.0
      %1368 = vmatmul.mubr.f32.gmra.mxu0 %v1252
      %v1369 = vpop.f32.mrf.mxu0
      %v1370 = vadd.f32 0.0, %v1369
      %v1371 = vpop.f32.mrf.mxu0
      %1372 = vmatprep.mubr.f32.mxu0 0.0
      %1373 = vmatmul.mubr.f32.gmra.mxu0 %v1253
      %v1374 = vpop.f32.mrf.mxu0
      %v1375 = vadd.f32 0.0, %v1374
      %v1376 = vpop.f32.mrf.mxu0
      %1377 = vmatprep.mubr.f32.mxu0 0.0
      %1378 = vmatmul.mubr.f32.gmra.mxu0 %v1254
      %v1379 = vpop.f32.mrf.mxu0
      %v1380 = vadd.f32 0.0, %v1379
      %v1381 = vpop.f32.mrf.mxu0
      %1382 = vmatprep.mubr.f32.mxu0 0.0
      %1383 = vmatmul.mubr.f32.gmra.mxu0 %v1255
      %v1384 = vpop.f32.mrf.mxu0
      %v1385 = vadd.f32 0.0, %v1384
      %v1386 = vpop.f32.mrf.mxu0
      %1387 = vdwg.mxu0
      %v1388 = vadd.f32 %v1236, %v1340
      %v1389 = vadd.f32 %v1237, %v1345
      %v1390 = vadd.f32 %v1238, %v1350
      %v1391 = vadd.f32 %v1239, %v1355
      %v1392 = vadd.f32 %v1240, %v1360
      %v1393 = vadd.f32 %v1241, %v1365
      %v1394 = vadd.f32 %v1242, %v1370
      %v1395 = vadd.f32 %v1243, %v1375
      %v1396 = vadd.f32 %v1244, %v1380
      %v1397 = vadd.f32 %v1245, %v1385
      %v1398 = vld [vmem:[#allocation2 + $0xc] sm:$0xff]
      %v1399 = vld [vmem:[#allocation2 + $0x14] sm:$0xff]
      %v1400 = vld [vmem:[#allocation2 + $0x1c] sm:$0xff]
      %v1401 = vld [vmem:[#allocation2 + $0x24] sm:$0xff]
      %v1402 = vld [vmem:[#allocation2 + $0x2c] sm:$0xff]
      %v1403 = vld [vmem:[#allocation2 + $0x34] sm:$0xff]
      %v1404 = vld [vmem:[#allocation2 + $0x3c] sm:$0xff]
      %v1405 = vld [vmem:[#allocation2 + $0x44] sm:$0xff]
      %v1406 = vld [vmem:[#allocation2 + $0x4c] sm:$0xff]
      %v1407 = vld [vmem:[#allocation2 + $0x54] sm:$0xff]
      %s1408 = scalar_lea.vmem %s3, 640
      %v1409 = vld [vmem:[%s1408] sm:$0xff]
      %v1410 = vld [vmem:[%s1408 + $0x8] sm:$0xff]
      %v1411 = vld [vmem:[%s1408 + $0x10] sm:$0xff]
      %v1412 = vld [vmem:[%s1408 + $0x18] sm:$0xff]
      %v1413 = vld [vmem:[%s1408 + $0x20] sm:$0xff]
      %v1414 = vld [vmem:[%s1408 + $0x28] sm:$0xff]
      %v1415 = vld [vmem:[%s1408 + $0x30] sm:$0xff]
      %v1416 = vld [vmem:[%s1408 + $0x38] sm:$0xff]
      %v1417 = vld [vmem:[%s1408 + $0x40] sm:$0xff]
      %v1418 = vld [vmem:[%s1408 + $0x48] sm:$0xff]
      %v1419 = vld [vmem:[%s1408 + $0x50] sm:$0xff]
      %v1420 = vld [vmem:[%s1408 + $0x58] sm:$0xff]
      %v1421 = vld [vmem:[%s1408 + $0x60] sm:$0xff]
      %v1422 = vld [vmem:[%s1408 + $0x68] sm:$0xff]
      %v1423 = vld [vmem:[%s1408 + $0x70] sm:$0xff]
      %v1424 = vld [vmem:[%s1408 + $0x78] sm:$0xff]
      %1425 = vmatprep.subr.mxu0 0.0
      %1426 = vmatpush1.msra.mxu0 %v1424
      %1427 = vmatprep.subr.mxu0 0.0
      %1428 = vmatpush1.msra.mxu0 %v1423
      %1429 = vmatprep.subr.mxu0 0.0
      %1430 = vmatpush1.msra.mxu0 %v1422
      %1431 = vmatprep.subr.mxu0 0.0
      %1432 = vmatpush1.msra.mxu0 %v1421
      %1433 = vmatprep.subr.mxu0 0.0
      %1434 = vmatpush1.msra.mxu0 %v1420
      %1435 = vmatprep.subr.mxu0 0.0
      %1436 = vmatpush1.msra.mxu0 %v1419
      %1437 = vmatprep.subr.mxu0 0.0
      %1438 = vmatpush1.msra.mxu0 %v1418
      %1439 = vmatprep.subr.mxu0 0.0
      %1440 = vmatpush1.msra.mxu0 %v1417
      %1441 = vmatprep.subr.mxu0 0.0
      %1442 = vmatpush1.msra.mxu0 %v1416
      %1443 = vmatprep.subr.mxu0 0.0
      %1444 = vmatpush1.msra.mxu0 %v1415
      %1445 = vmatprep.subr.mxu0 0.0
      %1446 = vmatpush1.msra.mxu0 %v1414
      %1447 = vmatprep.subr.mxu0 0.0
      %1448 = vmatpush1.msra.mxu0 %v1413
      %1449 = vmatprep.subr.mxu0 0.0
      %1450 = vmatpush1.msra.mxu0 %v1412
      %1451 = vmatprep.subr.mxu0 0.0
      %1452 = vmatpush1.msra.mxu0 %v1411
      %1453 = vmatprep.subr.mxu0 0.0
      %1454 = vmatpush1.msra.mxu0 %v1410
      %1455 = vmatprep.subr.mxu0 0.0
      %1456 = vmatpush1.msra.mxu0 %v1409
      %1457 = vmatprep.subr.mxu0 0.0
      %1458 = vmatpush2.msra.mxu0 0.0
      %1459 = vmatprep.subr.mxu0 0.0
      %1460 = vmatpush2.msra.mxu0 0.0
      %1461 = vmatprep.subr.mxu0 0.0
      %1462 = vmatpush2.msra.mxu0 0.0
      %1463 = vmatprep.subr.mxu0 0.0
      %1464 = vmatpush2.msra.mxu0 0.0
      %1465 = vmatprep.subr.mxu0 0.0
      %1466 = vmatpush2.msra.mxu0 0.0
      %1467 = vmatprep.subr.mxu0 0.0
      %1468 = vmatpush2.msra.mxu0 0.0
      %1469 = vmatprep.subr.mxu0 0.0
      %1470 = vmatpush2.msra.mxu0 0.0
      %1471 = vmatprep.subr.mxu0 0.0
      %1472 = vmatpush2.msra.mxu0 0.0
      %1473 = vmatprep.subr.mxu0 0.0
      %1474 = vmatpush2.msra.mxu0 0.0
      %1475 = vmatprep.subr.mxu0 0.0
      %1476 = vmatpush2.msra.mxu0 0.0
      %1477 = vmatprep.subr.mxu0 0.0
      %1478 = vmatpush2.msra.mxu0 0.0
      %1479 = vmatprep.subr.mxu0 0.0
      %1480 = vmatpush2.msra.mxu0 0.0
      %1481 = vmatprep.subr.mxu0 0.0
      %1482 = vmatpush2.msra.mxu0 0.0
      %1483 = vmatprep.subr.mxu0 0.0
      %1484 = vmatpush2.msra.mxu0 0.0
      %1485 = vmatprep.subr.mxu0 0.0
      %1486 = vmatpush2.msra.mxu0 0.0
      %1487 = vmatprep.subr.mxu0 0.0
      %1488 = vmatpush2.msra.mxu0 0.0
      %1489 = vmatprep.mubr.f32.mxu0 0.0
      %1490 = vmatmul.mubr.f32.gmra.mxu0 %v1398
      %v1491 = vpop.f32.mrf.mxu0
      %v1492 = vadd.f32 0.0, %v1491
      %v1493 = vpop.f32.mrf.mxu0
      %1494 = vmatprep.mubr.f32.mxu0 0.0
      %1495 = vmatmul.mubr.f32.gmra.mxu0 %v1399
      %v1496 = vpop.f32.mrf.mxu0
      %v1497 = vadd.f32 0.0, %v1496
      %v1498 = vpop.f32.mrf.mxu0
      %1499 = vmatprep.mubr.f32.mxu0 0.0
      %1500 = vmatmul.mubr.f32.gmra.mxu0 %v1400
      %v1501 = vpop.f32.mrf.mxu0
      %v1502 = vadd.f32 0.0, %v1501
      %v1503 = vpop.f32.mrf.mxu0
      %1504 = vmatprep.mubr.f32.mxu0 0.0
      %1505 = vmatmul.mubr.f32.gmra.mxu0 %v1401
      %v1506 = vpop.f32.mrf.mxu0
      %v1507 = vadd.f32 0.0, %v1506
      %v1508 = vpop.f32.mrf.mxu0
      %1509 = vmatprep.mubr.f32.mxu0 0.0
      %1510 = vmatmul.mubr.f32.gmra.mxu0 %v1402
      %v1511 = vpop.f32.mrf.mxu0
      %v1512 = vadd.f32 0.0, %v1511
      %v1513 = vpop.f32.mrf.mxu0
      %1514 = vmatprep.mubr.f32.mxu0 0.0
      %1515 = vmatmul.mubr.f32.gmra.mxu0 %v1403
      %v1516 = vpop.f32.mrf.mxu0
      %v1517 = vadd.f32 0.0, %v1516
      %v1518 = vpop.f32.mrf.mxu0
      %1519 = vmatprep.mubr.f32.mxu0 0.0
      %1520 = vmatmul.mubr.f32.gmra.mxu0 %v1404
      %v1521 = vpop.f32.mrf.mxu0
      %v1522 = vadd.f32 0.0, %v1521
      %v1523 = vpop.f32.mrf.mxu0
      %1524 = vmatprep.mubr.f32.mxu0 0.0
      %1525 = vmatmul.mubr.f32.gmra.mxu0 %v1405
      %v1526 = vpop.f32.mrf.mxu0
      %v1527 = vadd.f32 0.0, %v1526
      %v1528 = vpop.f32.mrf.mxu0
      %1529 = vmatprep.mubr.f32.mxu0 0.0
      %1530 = vmatmul.mubr.f32.gmra.mxu0 %v1406
      %v1531 = vpop.f32.mrf.mxu0
      %v1532 = vadd.f32 0.0, %v1531
      %v1533 = vpop.f32.mrf.mxu0
      %1534 = vmatprep.mubr.f32.mxu0 0.0
      %1535 = vmatmul.mubr.f32.gmra.mxu0 %v1407
      %v1536 = vpop.f32.mrf.mxu0
      %v1537 = vadd.f32 0.0, %v1536
      %v1538 = vpop.f32.mrf.mxu0
      %1539 = vdwg.mxu0
      %v1540 = vadd.f32 %v1388, %v1492
      %v1541 = vadd.f32 %v1389, %v1497
      %v1542 = vadd.f32 %v1390, %v1502
      %v1543 = vadd.f32 %v1391, %v1507
      %v1544 = vadd.f32 %v1392, %v1512
      %v1545 = vadd.f32 %v1393, %v1517
      %v1546 = vadd.f32 %v1394, %v1522
      %v1547 = vadd.f32 %v1395, %v1527
      %v1548 = vadd.f32 %v1396, %v1532
      %v1549 = vadd.f32 %v1397, %v1537
      %v1550 = vld [vmem:[#allocation2 + $0x14] sm:$0xff]
      %v1551 = vld [vmem:[#allocation2 + $0x1c] sm:$0xff]
      %v1552 = vld [vmem:[#allocation2 + $0x24] sm:$0xff]
      %v1553 = vld [vmem:[#allocation2 + $0x2c] sm:$0xff]
      %v1554 = vld [vmem:[#allocation2 + $0x34] sm:$0xff]
      %v1555 = vld [vmem:[#allocation2 + $0x3c] sm:$0xff]
      %v1556 = vld [vmem:[#allocation2 + $0x44] sm:$0xff]
      %v1557 = vld [vmem:[#allocation2 + $0x4c] sm:$0xff]
      %v1558 = vld [vmem:[#allocation2 + $0x54] sm:$0xff]
      %v1559 = vld [vmem:[#allocation2 + $0x5c] sm:$0xff]
      %s1560 = scalar_lea.vmem %s3, 768
      %v1561 = vld [vmem:[%s1560] sm:$0xff]
      %v1562 = vld [vmem:[%s1560 + $0x8] sm:$0xff]
      %v1563 = vld [vmem:[%s1560 + $0x10] sm:$0xff]
      %v1564 = vld [vmem:[%s1560 + $0x18] sm:$0xff]
      %v1565 = vld [vmem:[%s1560 + $0x20] sm:$0xff]
      %v1566 = vld [vmem:[%s1560 + $0x28] sm:$0xff]
      %v1567 = vld [vmem:[%s1560 + $0x30] sm:$0xff]
      %v1568 = vld [vmem:[%s1560 + $0x38] sm:$0xff]
      %v1569 = vld [vmem:[%s1560 + $0x40] sm:$0xff]
      %v1570 = vld [vmem:[%s1560 + $0x48] sm:$0xff]
      %v1571 = vld [vmem:[%s1560 + $0x50] sm:$0xff]
      %v1572 = vld [vmem:[%s1560 + $0x58] sm:$0xff]
      %v1573 = vld [vmem:[%s1560 + $0x60] sm:$0xff]
      %v1574 = vld [vmem:[%s1560 + $0x68] sm:$0xff]
      %v1575 = vld [vmem:[%s1560 + $0x70] sm:$0xff]
      %v1576 = vld [vmem:[%s1560 + $0x78] sm:$0xff]
      %1577 = vmatprep.subr.mxu0 0.0
      %1578 = vmatpush1.msra.mxu0 %v1576
      %1579 = vmatprep.subr.mxu0 0.0
      %1580 = vmatpush1.msra.mxu0 %v1575
      %1581 = vmatprep.subr.mxu0 0.0
      %1582 = vmatpush1.msra.mxu0 %v1574
      %1583 = vmatprep.subr.mxu0 0.0
      %1584 = vmatpush1.msra.mxu0 %v1573
      %1585 = vmatprep.subr.mxu0 0.0
      %1586 = vmatpush1.msra.mxu0 %v1572
      %1587 = vmatprep.subr.mxu0 0.0
      %1588 = vmatpush1.msra.mxu0 %v1571
      %1589 = vmatprep.subr.mxu0 0.0
      %1590 = vmatpush1.msra.mxu0 %v1570
      %1591 = vmatprep.subr.mxu0 0.0
      %1592 = vmatpush1.msra.mxu0 %v1569
      %1593 = vmatprep.subr.mxu0 0.0
      %1594 = vmatpush1.msra.mxu0 %v1568
      %1595 = vmatprep.subr.mxu0 0.0
      %1596 = vmatpush1.msra.mxu0 %v1567
      %1597 = vmatprep.subr.mxu0 0.0
      %1598 = vmatpush1.msra.mxu0 %v1566
      %1599 = vmatprep.subr.mxu0 0.0
      %1600 = vmatpush1.msra.mxu0 %v1565
      %1601 = vmatprep.subr.mxu0 0.0
      %1602 = vmatpush1.msra.mxu0 %v1564
      %1603 = vmatprep.subr.mxu0 0.0
      %1604 = vmatpush1.msra.mxu0 %v1563
      %1605 = vmatprep.subr.mxu0 0.0
      %1606 = vmatpush1.msra.mxu0 %v1562
      %1607 = vmatprep.subr.mxu0 0.0
      %1608 = vmatpush1.msra.mxu0 %v1561
      %1609 = vmatprep.subr.mxu0 0.0
      %1610 = vmatpush2.msra.mxu0 0.0
      %1611 = vmatprep.subr.mxu0 0.0
      %1612 = vmatpush2.msra.mxu0 0.0
      %1613 = vmatprep.subr.mxu0 0.0
      %1614 = vmatpush2.msra.mxu0 0.0
      %1615 = vmatprep.subr.mxu0 0.0
      %1616 = vmatpush2.msra.mxu0 0.0
      %1617 = vmatprep.subr.mxu0 0.0
      %1618 = vmatpush2.msra.mxu0 0.0
      %1619 = vmatprep.subr.mxu0 0.0
      %1620 = vmatpush2.msra.mxu0 0.0
      %1621 = vmatprep.subr.mxu0 0.0
      %1622 = vmatpush2.msra.mxu0 0.0
      %1623 = vmatprep.subr.mxu0 0.0
      %1624 = vmatpush2.msra.mxu0 0.0
      %1625 = vmatprep.subr.mxu0 0.0
      %1626 = vmatpush2.msra.mxu0 0.0
      %1627 = vmatprep.subr.mxu0 0.0
      %1628 = vmatpush2.msra.mxu0 0.0
      %1629 = vmatprep.subr.mxu0 0.0
      %1630 = vmatpush2.msra.mxu0 0.0
      %1631 = vmatprep.subr.mxu0 0.0
      %1632 = vmatpush2.msra.mxu0 0.0
      %1633 = vmatprep.subr.mxu0 0.0
      %1634 = vmatpush2.msra.mxu0 0.0
      %1635 = vmatprep.subr.mxu0 0.0
      %1636 = vmatpush2.msra.mxu0 0.0
      %1637 = vmatprep.subr.mxu0 0.0
      %1638 = vmatpush2.msra.mxu0 0.0
      %1639 = vmatprep.subr.mxu0 0.0
      %1640 = vmatpush2.msra.mxu0 0.0
      %1641 = vmatprep.mubr.f32.mxu0 0.0
      %1642 = vmatmul.mubr.f32.gmra.mxu0 %v1550
      %v1643 = vpop.f32.mrf.mxu0
      %v1644 = vadd.f32 0.0, %v1643
      %v1645 = vpop.f32.mrf.mxu0
      %1646 = vmatprep.mubr.f32.mxu0 0.0
      %1647 = vmatmul.mubr.f32.gmra.mxu0 %v1551
      %v1648 = vpop.f32.mrf.mxu0
      %v1649 = vadd.f32 0.0, %v1648
      %v1650 = vpop.f32.mrf.mxu0
      %1651 = vmatprep.mubr.f32.mxu0 0.0
      %1652 = vmatmul.mubr.f32.gmra.mxu0 %v1552
      %v1653 = vpop.f32.mrf.mxu0
      %v1654 = vadd.f32 0.0, %v1653
      %v1655 = vpop.f32.mrf.mxu0
      %1656 = vmatprep.mubr.f32.mxu0 0.0
      %1657 = vmatmul.mubr.f32.gmra.mxu0 %v1553
      %v1658 = vpop.f32.mrf.mxu0
      %v1659 = vadd.f32 0.0, %v1658
      %v1660 = vpop.f32.mrf.mxu0
      %1661 = vmatprep.mubr.f32.mxu0 0.0
      %1662 = vmatmul.mubr.f32.gmra.mxu0 %v1554
      %v1663 = vpop.f32.mrf.mxu0
      %v1664 = vadd.f32 0.0, %v1663
      %v1665 = vpop.f32.mrf.mxu0
      %1666 = vmatprep.mubr.f32.mxu0 0.0
      %1667 = vmatmul.mubr.f32.gmra.mxu0 %v1555
      %v1668 = vpop.f32.mrf.mxu0
      %v1669 = vadd.f32 0.0, %v1668
      %v1670 = vpop.f32.mrf.mxu0
      %1671 = vmatprep.mubr.f32.mxu0 0.0
      %1672 = vmatmul.mubr.f32.gmra.mxu0 %v1556
      %v1673 = vpop.f32.mrf.mxu0
      %v1674 = vadd.f32 0.0, %v1673
      %v1675 = vpop.f32.mrf.mxu0
      %1676 = vmatprep.mubr.f32.mxu0 0.0
      %1677 = vmatmul.mubr.f32.gmra.mxu0 %v1557
      %v1678 = vpop.f32.mrf.mxu0
      %v1679 = vadd.f32 0.0, %v1678
      %v1680 = vpop.f32.mrf.mxu0
      %1681 = vmatprep.mubr.f32.mxu0 0.0
      %1682 = vmatmul.mubr.f32.gmra.mxu0 %v1558
      %v1683 = vpop.f32.mrf.mxu0
      %v1684 = vadd.f32 0.0, %v1683
      %v1685 = vpop.f32.mrf.mxu0
      %1686 = vmatprep.mubr.f32.mxu0 0.0
      %1687 = vmatmul.mubr.f32.gmra.mxu0 %v1559
      %v1688 = vpop.f32.mrf.mxu0
      %v1689 = vadd.f32 0.0, %v1688
      %v1690 = vpop.f32.mrf.mxu0
      %1691 = vdwg.mxu0
      %v1692 = vadd.f32 %v1540, %v1644
      %v1693 = vadd.f32 %v1541, %v1649
      %v1694 = vadd.f32 %v1542, %v1654
      %v1695 = vadd.f32 %v1543, %v1659
      %v1696 = vadd.f32 %v1544, %v1664
      %v1697 = vadd.f32 %v1545, %v1669
      %v1698 = vadd.f32 %v1546, %v1674
      %v1699 = vadd.f32 %v1547, %v1679
      %v1700 = vadd.f32 %v1548, %v1684
      %v1701 = vadd.f32 %v1549, %v1689
      %v1702 = vld [vmem:[#allocation2 + $0x15] sm:$0xff]
      %v1703 = vld [vmem:[#allocation2 + $0x1d] sm:$0xff]
      %v1704 = vld [vmem:[#allocation2 + $0x25] sm:$0xff]
      %v1705 = vld [vmem:[#allocation2 + $0x2d] sm:$0xff]
      %v1706 = vld [vmem:[#allocation2 + $0x35] sm:$0xff]
      %v1707 = vld [vmem:[#allocation2 + $0x3d] sm:$0xff]
      %v1708 = vld [vmem:[#allocation2 + $0x45] sm:$0xff]
      %v1709 = vld [vmem:[#allocation2 + $0x4d] sm:$0xff]
      %v1710 = vld [vmem:[#allocation2 + $0x55] sm:$0xff]
      %v1711 = vld [vmem:[#allocation2 + $0x5d] sm:$0xff]
      %s1712 = scalar_lea.vmem %s3, 896
      %v1713 = vld [vmem:[%s1712] sm:$0xff]
      %v1714 = vld [vmem:[%s1712 + $0x8] sm:$0xff]
      %v1715 = vld [vmem:[%s1712 + $0x10] sm:$0xff]
      %v1716 = vld [vmem:[%s1712 + $0x18] sm:$0xff]
      %v1717 = vld [vmem:[%s1712 + $0x20] sm:$0xff]
      %v1718 = vld [vmem:[%s1712 + $0x28] sm:$0xff]
      %v1719 = vld [vmem:[%s1712 + $0x30] sm:$0xff]
      %v1720 = vld [vmem:[%s1712 + $0x38] sm:$0xff]
      %v1721 = vld [vmem:[%s1712 + $0x40] sm:$0xff]
      %v1722 = vld [vmem:[%s1712 + $0x48] sm:$0xff]
      %v1723 = vld [vmem:[%s1712 + $0x50] sm:$0xff]
      %v1724 = vld [vmem:[%s1712 + $0x58] sm:$0xff]
      %v1725 = vld [vmem:[%s1712 + $0x60] sm:$0xff]
      %v1726 = vld [vmem:[%s1712 + $0x68] sm:$0xff]
      %v1727 = vld [vmem:[%s1712 + $0x70] sm:$0xff]
      %v1728 = vld [vmem:[%s1712 + $0x78] sm:$0xff]
      %1729 = vmatprep.subr.mxu0 0.0
      %1730 = vmatpush1.msra.mxu0 %v1728
      %1731 = vmatprep.subr.mxu0 0.0
      %1732 = vmatpush1.msra.mxu0 %v1727
      %1733 = vmatprep.subr.mxu0 0.0
      %1734 = vmatpush1.msra.mxu0 %v1726
      %1735 = vmatprep.subr.mxu0 0.0
      %1736 = vmatpush1.msra.mxu0 %v1725
      %1737 = vmatprep.subr.mxu0 0.0
      %1738 = vmatpush1.msra.mxu0 %v1724
      %1739 = vmatprep.subr.mxu0 0.0
      %1740 = vmatpush1.msra.mxu0 %v1723
      %1741 = vmatprep.subr.mxu0 0.0
      %1742 = vmatpush1.msra.mxu0 %v1722
      %1743 = vmatprep.subr.mxu0 0.0
      %1744 = vmatpush1.msra.mxu0 %v1721
      %1745 = vmatprep.subr.mxu0 0.0
      %1746 = vmatpush1.msra.mxu0 %v1720
      %1747 = vmatprep.subr.mxu0 0.0
      %1748 = vmatpush1.msra.mxu0 %v1719
      %1749 = vmatprep.subr.mxu0 0.0
      %1750 = vmatpush1.msra.mxu0 %v1718
      %1751 = vmatprep.subr.mxu0 0.0
      %1752 = vmatpush1.msra.mxu0 %v1717
      %1753 = vmatprep.subr.mxu0 0.0
      %1754 = vmatpush1.msra.mxu0 %v1716
      %1755 = vmatprep.subr.mxu0 0.0
      %1756 = vmatpush1.msra.mxu0 %v1715
      %1757 = vmatprep.subr.mxu0 0.0
      %1758 = vmatpush1.msra.mxu0 %v1714
      %1759 = vmatprep.subr.mxu0 0.0
      %1760 = vmatpush1.msra.mxu0 %v1713
      %1761 = vmatprep.subr.mxu0 0.0
      %1762 = vmatpush2.msra.mxu0 0.0
      %1763 = vmatprep.subr.mxu0 0.0
      %1764 = vmatpush2.msra.mxu0 0.0
      %1765 = vmatprep.subr.mxu0 0.0
      %1766 = vmatpush2.msra.mxu0 0.0
      %1767 = vmatprep.subr.mxu0 0.0
      %1768 = vmatpush2.msra.mxu0 0.0
      %1769 = vmatprep.subr.mxu0 0.0
      %1770 = vmatpush2.msra.mxu0 0.0
      %1771 = vmatprep.subr.mxu0 0.0
      %1772 = vmatpush2.msra.mxu0 0.0
      %1773 = vmatprep.subr.mxu0 0.0
      %1774 = vmatpush2.msra.mxu0 0.0
      %1775 = vmatprep.subr.mxu0 0.0
      %1776 = vmatpush2.msra.mxu0 0.0
      %1777 = vmatprep.subr.mxu0 0.0
      %1778 = vmatpush2.msra.mxu0 0.0
      %1779 = vmatprep.subr.mxu0 0.0
      %1780 = vmatpush2.msra.mxu0 0.0
      %1781 = vmatprep.subr.mxu0 0.0
      %1782 = vmatpush2.msra.mxu0 0.0
      %1783 = vmatprep.subr.mxu0 0.0
      %1784 = vmatpush2.msra.mxu0 0.0
      %1785 = vmatprep.subr.mxu0 0.0
      %1786 = vmatpush2.msra.mxu0 0.0
      %1787 = vmatprep.subr.mxu0 0.0
      %1788 = vmatpush2.msra.mxu0 0.0
      %1789 = vmatprep.subr.mxu0 0.0
      %1790 = vmatpush2.msra.mxu0 0.0
      %1791 = vmatprep.subr.mxu0 0.0
      %1792 = vmatpush2.msra.mxu0 0.0
      %1793 = vmatprep.mubr.f32.mxu0 0.0
      %1794 = vmatmul.mubr.f32.gmra.mxu0 %v1702
      %v1795 = vpop.f32.mrf.mxu0
      %v1796 = vadd.f32 0.0, %v1795
      %v1797 = vpop.f32.mrf.mxu0
      %1798 = vmatprep.mubr.f32.mxu0 0.0
      %1799 = vmatmul.mubr.f32.gmra.mxu0 %v1703
      %v1800 = vpop.f32.mrf.mxu0
      %v1801 = vadd.f32 0.0, %v1800
      %v1802 = vpop.f32.mrf.mxu0
      %1803 = vmatprep.mubr.f32.mxu0 0.0
      %1804 = vmatmul.mubr.f32.gmra.mxu0 %v1704
      %v1805 = vpop.f32.mrf.mxu0
      %v1806 = vadd.f32 0.0, %v1805
      %v1807 = vpop.f32.mrf.mxu0
      %1808 = vmatprep.mubr.f32.mxu0 0.0
      %1809 = vmatmul.mubr.f32.gmra.mxu0 %v1705
      %v1810 = vpop.f32.mrf.mxu0
      %v1811 = vadd.f32 0.0, %v1810
      %v1812 = vpop.f32.mrf.mxu0
      %1813 = vmatprep.mubr.f32.mxu0 0.0
      %1814 = vmatmul.mubr.f32.gmra.mxu0 %v1706
      %v1815 = vpop.f32.mrf.mxu0
      %v1816 = vadd.f32 0.0, %v1815
      %v1817 = vpop.f32.mrf.mxu0
      %1818 = vmatprep.mubr.f32.mxu0 0.0
      %1819 = vmatmul.mubr.f32.gmra.mxu0 %v1707
      %v1820 = vpop.f32.mrf.mxu0
      %v1821 = vadd.f32 0.0, %v1820
      %v1822 = vpop.f32.mrf.mxu0
      %1823 = vmatprep.mubr.f32.mxu0 0.0
      %1824 = vmatmul.mubr.f32.gmra.mxu0 %v1708
      %v1825 = vpop.f32.mrf.mxu0
      %v1826 = vadd.f32 0.0, %v1825
      %v1827 = vpop.f32.mrf.mxu0
      %1828 = vmatprep.mubr.f32.mxu0 0.0
      %1829 = vmatmul.mubr.f32.gmra.mxu0 %v1709
      %v1830 = vpop.f32.mrf.mxu0
      %v1831 = vadd.f32 0.0, %v1830
      %v1832 = vpop.f32.mrf.mxu0
      %1833 = vmatprep.mubr.f32.mxu0 0.0
      %1834 = vmatmul.mubr.f32.gmra.mxu0 %v1710
      %v1835 = vpop.f32.mrf.mxu0
      %v1836 = vadd.f32 0.0, %v1835
      %v1837 = vpop.f32.mrf.mxu0
      %1838 = vmatprep.mubr.f32.mxu0 0.0
      %1839 = vmatmul.mubr.f32.gmra.mxu0 %v1711
      %v1840 = vpop.f32.mrf.mxu0
      %v1841 = vadd.f32 0.0, %v1840
      %v1842 = vpop.f32.mrf.mxu0
      %1843 = vdwg.mxu0
      %v1844 = vadd.f32 %v1692, %v1796
      %v1845 = vadd.f32 %v1693, %v1801
      %v1846 = vadd.f32 %v1694, %v1806
      %v1847 = vadd.f32 %v1695, %v1811
      %v1848 = vadd.f32 %v1696, %v1816
      %v1849 = vadd.f32 %v1697, %v1821
      %v1850 = vadd.f32 %v1698, %v1826
      %v1851 = vadd.f32 %v1699, %v1831
      %v1852 = vadd.f32 %v1700, %v1836
      %v1853 = vadd.f32 %v1701, %v1841
      %v1854 = vld [vmem:[#allocation2 + $0x16] sm:$0xff]
      %v1855 = vld [vmem:[#allocation2 + $0x1e] sm:$0xff]
      %v1856 = vld [vmem:[#allocation2 + $0x26] sm:$0xff]
      %v1857 = vld [vmem:[#allocation2 + $0x2e] sm:$0xff]
      %v1858 = vld [vmem:[#allocation2 + $0x36] sm:$0xff]
      %v1859 = vld [vmem:[#allocation2 + $0x3e] sm:$0xff]
      %v1860 = vld [vmem:[#allocation2 + $0x46] sm:$0xff]
      %v1861 = vld [vmem:[#allocation2 + $0x4e] sm:$0xff]
      %v1862 = vld [vmem:[#allocation2 + $0x56] sm:$0xff]
      %v1863 = vld [vmem:[#allocation2 + $0x5e] sm:$0xff]
      %s1864 = scalar_lea.vmem %s3, 1024
      %v1865 = vld [vmem:[%s1864] sm:$0xff]
      %v1866 = vld [vmem:[%s1864 + $0x8] sm:$0xff]
      %v1867 = vld [vmem:[%s1864 + $0x10] sm:$0xff]
      %v1868 = vld [vmem:[%s1864 + $0x18] sm:$0xff]
      %v1869 = vld [vmem:[%s1864 + $0x20] sm:$0xff]
      %v1870 = vld [vmem:[%s1864 + $0x28] sm:$0xff]
      %v1871 = vld [vmem:[%s1864 + $0x30] sm:$0xff]
      %v1872 = vld [vmem:[%s1864 + $0x38] sm:$0xff]
      %v1873 = vld [vmem:[%s1864 + $0x40] sm:$0xff]
      %v1874 = vld [vmem:[%s1864 + $0x48] sm:$0xff]
      %v1875 = vld [vmem:[%s1864 + $0x50] sm:$0xff]
      %v1876 = vld [vmem:[%s1864 + $0x58] sm:$0xff]
      %v1877 = vld [vmem:[%s1864 + $0x60] sm:$0xff]
      %v1878 = vld [vmem:[%s1864 + $0x68] sm:$0xff]
      %v1879 = vld [vmem:[%s1864 + $0x70] sm:$0xff]
      %v1880 = vld [vmem:[%s1864 + $0x78] sm:$0xff]
      %1881 = vmatprep.subr.mxu0 0.0
      %1882 = vmatpush1.msra.mxu0 %v1880
      %1883 = vmatprep.subr.mxu0 0.0
      %1884 = vmatpush1.msra.mxu0 %v1879
      %1885 = vmatprep.subr.mxu0 0.0
      %1886 = vmatpush1.msra.mxu0 %v1878
      %1887 = vmatprep.subr.mxu0 0.0
      %1888 = vmatpush1.msra.mxu0 %v1877
      %1889 = vmatprep.subr.mxu0 0.0
      %1890 = vmatpush1.msra.mxu0 %v1876
      %1891 = vmatprep.subr.mxu0 0.0
      %1892 = vmatpush1.msra.mxu0 %v1875
      %1893 = vmatprep.subr.mxu0 0.0
      %1894 = vmatpush1.msra.mxu0 %v1874
      %1895 = vmatprep.subr.mxu0 0.0
      %1896 = vmatpush1.msra.mxu0 %v1873
      %1897 = vmatprep.subr.mxu0 0.0
      %1898 = vmatpush1.msra.mxu0 %v1872
      %1899 = vmatprep.subr.mxu0 0.0
      %1900 = vmatpush1.msra.mxu0 %v1871
      %1901 = vmatprep.subr.mxu0 0.0
      %1902 = vmatpush1.msra.mxu0 %v1870
      %1903 = vmatprep.subr.mxu0 0.0
      %1904 = vmatpush1.msra.mxu0 %v1869
      %1905 = vmatprep.subr.mxu0 0.0
      %1906 = vmatpush1.msra.mxu0 %v1868
      %1907 = vmatprep.subr.mxu0 0.0
      %1908 = vmatpush1.msra.mxu0 %v1867
      %1909 = vmatprep.subr.mxu0 0.0
      %1910 = vmatpush1.msra.mxu0 %v1866
      %1911 = vmatprep.subr.mxu0 0.0
      %1912 = vmatpush1.msra.mxu0 %v1865
      %1913 = vmatprep.subr.mxu0 0.0
      %1914 = vmatpush2.msra.mxu0 0.0
      %1915 = vmatprep.subr.mxu0 0.0
      %1916 = vmatpush2.msra.mxu0 0.0
      %1917 = vmatprep.subr.mxu0 0.0
      %1918 = vmatpush2.msra.mxu0 0.0
      %1919 = vmatprep.subr.mxu0 0.0
      %1920 = vmatpush2.msra.mxu0 0.0
      %1921 = vmatprep.subr.mxu0 0.0
      %1922 = vmatpush2.msra.mxu0 0.0
      %1923 = vmatprep.subr.mxu0 0.0
      %1924 = vmatpush2.msra.mxu0 0.0
      %1925 = vmatprep.subr.mxu0 0.0
      %1926 = vmatpush2.msra.mxu0 0.0
      %1927 = vmatprep.subr.mxu0 0.0
      %1928 = vmatpush2.msra.mxu0 0.0
      %1929 = vmatprep.subr.mxu0 0.0
      %1930 = vmatpush2.msra.mxu0 0.0
      %1931 = vmatprep.subr.mxu0 0.0
      %1932 = vmatpush2.msra.mxu0 0.0
      %1933 = vmatprep.subr.mxu0 0.0
      %1934 = vmatpush2.msra.mxu0 0.0
      %1935 = vmatprep.subr.mxu0 0.0
      %1936 = vmatpush2.msra.mxu0 0.0
      %1937 = vmatprep.subr.mxu0 0.0
      %1938 = vmatpush2.msra.mxu0 0.0
      %1939 = vmatprep.subr.mxu0 0.0
      %1940 = vmatpush2.msra.mxu0 0.0
      %1941 = vmatprep.subr.mxu0 0.0
      %1942 = vmatpush2.msra.mxu0 0.0
      %1943 = vmatprep.subr.mxu0 0.0
      %1944 = vmatpush2.msra.mxu0 0.0
      %1945 = vmatprep.mubr.f32.mxu0 0.0
      %1946 = vmatmul.mubr.f32.gmra.mxu0 %v1854
      %v1947 = vpop.f32.mrf.mxu0
      %v1948 = vadd.f32 0.0, %v1947
      %v1949 = vpop.f32.mrf.mxu0
      %1950 = vmatprep.mubr.f32.mxu0 0.0
      %1951 = vmatmul.mubr.f32.gmra.mxu0 %v1855
      %v1952 = vpop.f32.mrf.mxu0
      %v1953 = vadd.f32 0.0, %v1952
      %v1954 = vpop.f32.mrf.mxu0
      %1955 = vmatprep.mubr.f32.mxu0 0.0
      %1956 = vmatmul.mubr.f32.gmra.mxu0 %v1856
      %v1957 = vpop.f32.mrf.mxu0
      %v1958 = vadd.f32 0.0, %v1957
      %v1959 = vpop.f32.mrf.mxu0
      %1960 = vmatprep.mubr.f32.mxu0 0.0
      %1961 = vmatmul.mubr.f32.gmra.mxu0 %v1857
      %v1962 = vpop.f32.mrf.mxu0
      %v1963 = vadd.f32 0.0, %v1962
      %v1964 = vpop.f32.mrf.mxu0
      %1965 = vmatprep.mubr.f32.mxu0 0.0
      %1966 = vmatmul.mubr.f32.gmra.mxu0 %v1858
      %v1967 = vpop.f32.mrf.mxu0
      %v1968 = vadd.f32 0.0, %v1967
      %v1969 = vpop.f32.mrf.mxu0
      %1970 = vmatprep.mubr.f32.mxu0 0.0
      %1971 = vmatmul.mubr.f32.gmra.mxu0 %v1859
      %v1972 = vpop.f32.mrf.mxu0
      %v1973 = vadd.f32 0.0, %v1972
      %v1974 = vpop.f32.mrf.mxu0
      %1975 = vmatprep.mubr.f32.mxu0 0.0
      %1976 = vmatmul.mubr.f32.gmra.mxu0 %v1860
      %v1977 = vpop.f32.mrf.mxu0
      %v1978 = vadd.f32 0.0, %v1977
      %v1979 = vpop.f32.mrf.mxu0
      %1980 = vmatprep.mubr.f32.mxu0 0.0
      %1981 = vmatmul.mubr.f32.gmra.mxu0 %v1861
      %v1982 = vpop.f32.mrf.mxu0
      %v1983 = vadd.f32 0.0, %v1982
      %v1984 = vpop.f32.mrf.mxu0
      %1985 = vmatprep.mubr.f32.mxu0 0.0
      %1986 = vmatmul.mubr.f32.gmra.mxu0 %v1862
      %v1987 = vpop.f32.mrf.mxu0
      %v1988 = vadd.f32 0.0, %v1987
      %v1989 = vpop.f32.mrf.mxu0
      %1990 = vmatprep.mubr.f32.mxu0 0.0
      %1991 = vmatmul.mubr.f32.gmra.mxu0 %v1863
      %v1992 = vpop.f32.mrf.mxu0
      %v1993 = vadd.f32 0.0, %v1992
      %v1994 = vpop.f32.mrf.mxu0
      %1995 = vdwg.mxu0
      %v1996 = vadd.f32 %v1844, %v1948
      %v1997 = vadd.f32 %v1845, %v1953
      %v1998 = vadd.f32 %v1846, %v1958
      %v1999 = vadd.f32 %v1847, %v1963
      %v2000 = vadd.f32 %v1848, %v1968
      %v2001 = vadd.f32 %v1849, %v1973
      %v2002 = vadd.f32 %v1850, %v1978
      %v2003 = vadd.f32 %v1851, %v1983
      %v2004 = vadd.f32 %v1852, %v1988
      %v2005 = vadd.f32 %v1853, %v1993
      %v2006 = vld [vmem:[%s320] sm:$0xff]
      %v2007 = vld [vmem:[%s320 + $0x8] sm:$0xff]
      %v2008 = vld [vmem:[%s320 + $0x10] sm:$0xff]
      %v2009 = vld [vmem:[%s320 + $0x18] sm:$0xff]
      %v2010 = vld [vmem:[%s320 + $0x20] sm:$0xff]
      %v2011 = vld [vmem:[%s320 + $0x28] sm:$0xff]
      %v2012 = vld [vmem:[%s320 + $0x30] sm:$0xff]
      %v2013 = vld [vmem:[%s320 + $0x38] sm:$0xff]
      %v2014 = vld [vmem:[%s320 + $0x40] sm:$0xff]
      %v2015 = vld [vmem:[%s320 + $0x48] sm:$0xff]
      %v2016 = vld [vmem:[%s4] sm:$0xff]
      %v2017 = vld [vmem:[%s4 + $0x8] sm:$0xff]
      %v2018 = vld [vmem:[%s4 + $0x10] sm:$0xff]
      %v2019 = vld [vmem:[%s4 + $0x18] sm:$0xff]
      %v2020 = vld [vmem:[%s4 + $0x20] sm:$0xff]
      %v2021 = vld [vmem:[%s4 + $0x28] sm:$0xff]
      %v2022 = vld [vmem:[%s4 + $0x30] sm:$0xff]
      %v2023 = vld [vmem:[%s4 + $0x38] sm:$0xff]
      %v2024 = vld [vmem:[%s4 + $0x40] sm:$0xff]
      %v2025 = vld [vmem:[%s4 + $0x48] sm:$0xff]
      %v2026 = vld [vmem:[%s4 + $0x50] sm:$0xff]
      %v2027 = vld [vmem:[%s4 + $0x58] sm:$0xff]
      %v2028 = vld [vmem:[%s4 + $0x60] sm:$0xff]
      %v2029 = vld [vmem:[%s4 + $0x68] sm:$0xff]
      %v2030 = vld [vmem:[%s4 + $0x70] sm:$0xff]
      %v2031 = vld [vmem:[%s4 + $0x78] sm:$0xff]
      %2032 = vmatprep.subr.mxu0 0.0
      %2033 = vmatpush1.msra.mxu0 %v2031
      %2034 = vmatprep.subr.mxu0 0.0
      %2035 = vmatpush1.msra.mxu0 %v2030
      %2036 = vmatprep.subr.mxu0 0.0
      %2037 = vmatpush1.msra.mxu0 %v2029
      %2038 = vmatprep.subr.mxu0 0.0
      %2039 = vmatpush1.msra.mxu0 %v2028
      %2040 = vmatprep.subr.mxu0 0.0
      %2041 = vmatpush1.msra.mxu0 %v2027
      %2042 = vmatprep.subr.mxu0 0.0
      %2043 = vmatpush1.msra.mxu0 %v2026
      %2044 = vmatprep.subr.mxu0 0.0
      %2045 = vmatpush1.msra.mxu0 %v2025
      %2046 = vmatprep.subr.mxu0 0.0
      %2047 = vmatpush1.msra.mxu0 %v2024
      %2048 = vmatprep.subr.mxu0 0.0
      %2049 = vmatpush1.msra.mxu0 %v2023
      %2050 = vmatprep.subr.mxu0 0.0
      %2051 = vmatpush1.msra.mxu0 %v2022
      %2052 = vmatprep.subr.mxu0 0.0
      %2053 = vmatpush1.msra.mxu0 %v2021
      %2054 = vmatprep.subr.mxu0 0.0
      %2055 = vmatpush1.msra.mxu0 %v2020
      %2056 = vmatprep.subr.mxu0 0.0
      %2057 = vmatpush1.msra.mxu0 %v2019
      %2058 = vmatprep.subr.mxu0 0.0
      %2059 = vmatpush1.msra.mxu0 %v2018
      %2060 = vmatprep.subr.mxu0 0.0
      %2061 = vmatpush1.msra.mxu0 %v2017
      %2062 = vmatprep.subr.mxu0 0.0
      %2063 = vmatpush1.msra.mxu0 %v2016
      %2064 = vmatprep.subr.mxu0 0.0
      %2065 = vmatpush2.msra.mxu0 0.0
      %2066 = vmatprep.subr.mxu0 0.0
      %2067 = vmatpush2.msra.mxu0 0.0
      %2068 = vmatprep.subr.mxu0 0.0
      %2069 = vmatpush2.msra.mxu0 0.0
      %2070 = vmatprep.subr.mxu0 0.0
      %2071 = vmatpush2.msra.mxu0 0.0
      %2072 = vmatprep.subr.mxu0 0.0
      %2073 = vmatpush2.msra.mxu0 0.0
      %2074 = vmatprep.subr.mxu0 0.0
      %2075 = vmatpush2.msra.mxu0 0.0
      %2076 = vmatprep.subr.mxu0 0.0
      %2077 = vmatpush2.msra.mxu0 0.0
      %2078 = vmatprep.subr.mxu0 0.0
      %2079 = vmatpush2.msra.mxu0 0.0
      %2080 = vmatprep.subr.mxu0 0.0
      %2081 = vmatpush2.msra.mxu0 0.0
      %2082 = vmatprep.subr.mxu0 0.0
      %2083 = vmatpush2.msra.mxu0 0.0
      %2084 = vmatprep.subr.mxu0 0.0
      %2085 = vmatpush2.msra.mxu0 0.0
      %2086 = vmatprep.subr.mxu0 0.0
      %2087 = vmatpush2.msra.mxu0 0.0
      %2088 = vmatprep.subr.mxu0 0.0
      %2089 = vmatpush2.msra.mxu0 0.0
      %2090 = vmatprep.subr.mxu0 0.0
      %2091 = vmatpush2.msra.mxu0 0.0
      %2092 = vmatprep.subr.mxu0 0.0
      %2093 = vmatpush2.msra.mxu0 0.0
      %2094 = vmatprep.subr.mxu0 0.0
      %2095 = vmatpush2.msra.mxu0 0.0
      %2096 = vmatprep.mubr.f32.mxu0 0.0
      %2097 = vmatmul.mubr.f32.gmra.mxu0 %v2006
      %v2098 = vpop.f32.mrf.mxu0
      %v2099 = vadd.f32 0.0, %v2098
      %v2100 = vpop.f32.mrf.mxu0
      %2101 = vmatprep.mubr.f32.mxu0 0.0
      %2102 = vmatmul.mubr.f32.gmra.mxu0 %v2007
      %v2103 = vpop.f32.mrf.mxu0
      %v2104 = vadd.f32 0.0, %v2103
      %v2105 = vpop.f32.mrf.mxu0
      %2106 = vmatprep.mubr.f32.mxu0 0.0
      %2107 = vmatmul.mubr.f32.gmra.mxu0 %v2008
      %v2108 = vpop.f32.mrf.mxu0
      %v2109 = vadd.f32 0.0, %v2108
      %v2110 = vpop.f32.mrf.mxu0
      %2111 = vmatprep.mubr.f32.mxu0 0.0
      %2112 = vmatmul.mubr.f32.gmra.mxu0 %v2009
      %v2113 = vpop.f32.mrf.mxu0
      %v2114 = vadd.f32 0.0, %v2113
      %v2115 = vpop.f32.mrf.mxu0
      %2116 = vmatprep.mubr.f32.mxu0 0.0
      %2117 = vmatmul.mubr.f32.gmra.mxu0 %v2010
      %v2118 = vpop.f32.mrf.mxu0
      %v2119 = vadd.f32 0.0, %v2118
      %v2120 = vpop.f32.mrf.mxu0
      %2121 = vmatprep.mubr.f32.mxu0 0.0
      %2122 = vmatmul.mubr.f32.gmra.mxu0 %v2011
      %v2123 = vpop.f32.mrf.mxu0
      %v2124 = vadd.f32 0.0, %v2123
      %v2125 = vpop.f32.mrf.mxu0
      %2126 = vmatprep.mubr.f32.mxu0 0.0
      %2127 = vmatmul.mubr.f32.gmra.mxu0 %v2012
      %v2128 = vpop.f32.mrf.mxu0
      %v2129 = vadd.f32 0.0, %v2128
      %v2130 = vpop.f32.mrf.mxu0
      %2131 = vmatprep.mubr.f32.mxu0 0.0
      %2132 = vmatmul.mubr.f32.gmra.mxu0 %v2013
      %v2133 = vpop.f32.mrf.mxu0
      %v2134 = vadd.f32 0.0, %v2133
      %v2135 = vpop.f32.mrf.mxu0
      %2136 = vmatprep.mubr.f32.mxu0 0.0
      %2137 = vmatmul.mubr.f32.gmra.mxu0 %v2014
      %v2138 = vpop.f32.mrf.mxu0
      %v2139 = vadd.f32 0.0, %v2138
      %v2140 = vpop.f32.mrf.mxu0
      %2141 = vmatprep.mubr.f32.mxu0 0.0
      %2142 = vmatmul.mubr.f32.gmra.mxu0 %v2015
      %v2143 = vpop.f32.mrf.mxu0
      %v2144 = vadd.f32 0.0, %v2143
      %v2145 = vpop.f32.mrf.mxu0
      %2146 = vdwg.mxu0
      %v2147 = vadd.f32 %v1996, %v2099
      %v2148 = vadd.f32 %v1997, %v2104
      %v2149 = vadd.f32 %v1998, %v2109
      %v2150 = vadd.f32 %v1999, %v2114
      %v2151 = vadd.f32 %v2000, %v2119
      %v2152 = vadd.f32 %v2001, %v2124
      %v2153 = vadd.f32 %v2002, %v2129
      %v2154 = vadd.f32 %v2003, %v2134
      %v2155 = vadd.f32 %v2004, %v2139
      %v2156 = vadd.f32 %v2005, %v2144
      %2157 = vst [vmem:[%s325] sm:$0xff] %v2147
      %2158 = vst [vmem:[%s325 + $0x8] sm:$0xff] %v2148
      %2159 = vst [vmem:[%s325 + $0x10] sm:$0xff] %v2149
      %2160 = vst [vmem:[%s325 + $0x18] sm:$0xff] %v2150
      %2161 = vst [vmem:[%s325 + $0x20] sm:$0xff] %v2151
      %2162 = vst [vmem:[%s325 + $0x28] sm:$0xff] %v2152
      %2163 = vst [vmem:[%s325 + $0x30] sm:$0xff] %v2153
      %2164 = vst [vmem:[%s325 + $0x38] sm:$0xff] %v2154
      %2165 = vst [vmem:[%s325 + $0x40] sm:$0xff] %v2155
      %2166 = vst [vmem:[%s325 + $0x48] sm:$0xff] %v2156
      %p2167 = scmp.lt.s32.totalorder %s19, 1
      %s2168 = scalar_select %p2167, %s19, 1
      %s2169 = smul.addr %s2168, 10
      %s2170 = smul.addr %s2169, 8
      %s2171 = scalar_lea.vmem %s8, %s2170
      // Predicated region
      $region53: #{basic_block_pallas.1} parent=51 // pred_check
        %p2172 = pneg %p215
      $region54: #{basic_block_pallas.1} parent=51 // pred_check_branch
        %2174 = sbr.rel (%p2172) target = $region56
      $region55: #{basic_block_pallas.1} parent=51 // pred_region
        _
      $region56: #{basic_block_pallas.1} parent=51 // pred_fallthru
        _
    $region52: #{basic_block_pallas.1} parent=5 // pred_fallthru
      _
    %p2175 = scmp.le.s32.totalorder 2, %s14
    // Predicated region
    $region57: #{basic_block_pallas.1} parent=5 // pred_check
      %p2176 = pneg %p2175
    $region58: #{basic_block_pallas.1} parent=5 // pred_check_branch
      %2178 = sbr.rel (%p2176) target = $region60
    $region59: #{basic_block_pallas.1} parent=5 // pred_region
      %s2179 = ssub.s32 %s14, 2
      // Predicated region
      $region61: #{basic_block_pallas.1} parent=59 // pred_check
        %p2180 = pneg %p221
      $region62: #{basic_block_pallas.1} parent=59 // pred_check_branch
        %2182 = sbr.rel (%p2180) target = $region64
      $region63: #{basic_block_pallas.1} parent=59 // pred_region
        %p2183 = scmp.lt.s32.totalorder %s20, 1
        %s2184 = scalar_select %p2183, %s20, 1
        %s2185 = smul.addr %s2184, 10
        %s2186 = smul.addr %s2185, 8
        %s2187 = scalar_lea.vmem %s8, %s2186
      $region64: #{basic_block_pallas.1} parent=59 // pred_fallthru
        _
    $region60: #{basic_block_pallas.1} parent=5 // pred_fallthru
      _
  $region6: #{basic_block_pallas.1} parent=0 // loop_footer
    %s18 = sadd.s32 1, %s14
  $region7: #{basic_block_pallas.1} parent=0 // loop_footer_branch
    %13 = sbr.rel target = $region3
  $region8: #{basic_block_pallas.1} parent=0 // loop_exit
    _

</llo_original>
